<compile_context>
chip_gen: v6e
topology: v6e:2x2x1
jax: 0.10.0
libtpu: 0.0.40
codegen_flags: <defaults>
</compile_context>

<pallas_src>
import functools
import math

import jax
import jax.numpy as jnp
import numpy as np
from jax.experimental import pallas as pl
from jax.experimental.pallas import tpu as pltpu  # noqa: F401  (TPU backend)

# ---- model hyperparameters (small, consistent with SAN(d_model, nhead)) ----
D_MODEL = 32
NHEAD = 4
HEAD_DIM = D_MODEL // NHEAD
SEQ_LEN = 8
BATCH = 2
LN_EPS = 1e-5
NEG_INF = -1e30


def san_kernel(x_ref, wqkv_ref, bqkv_ref, wo_ref, ln_ref, out_ref,
               *, n_batch, nhead, head_dim):
    """Single invocation over all rows R = L*N.

    x_ref    : (R, E)   f32   flattened (seq, batch) rows
    wqkv_ref : (E, 3E)  bf16  fused [Wq | Wk | Wv]  (y = x @ W)
    bqkv_ref : (1, 3E)  f32   fused [bq | bk | bv]
    wo_ref   : (E, E)   bf16  output projection (y = x @ W)
    ln_ref   : (3, E)   f32   packed [bo; gamma; beta]
    out_ref  : (R, E)   f32
    """
    x = x_ref[...]                                   # (R, E) f32
    R, E = x.shape

    # ---- fused QKV projection (bf16 MXU, f32 accumulation) ----
    qkv = jnp.dot(x.astype(jnp.bfloat16), wqkv_ref[...],
                  preferred_element_type=jnp.float32) + bqkv_ref[...]   # (R, 3E) f32

    q = qkv[:, :E]
    k = qkv[:, E:2 * E]
    v = qkv[:, 2 * E:]

    def heads(t):  # (R, E) -> (H, R, hd)
        return jnp.transpose(t.reshape(R, nhead, head_dim), (1, 0, 2))

    qh = heads(q).astype(jnp.bfloat16)
    kh = heads(k).astype(jnp.bfloat16)
    vh = heads(v).astype(jnp.bfloat16)

    # ---- per-head scaled dot-product scores ----
    scale = 1.0 / math.sqrt(head_dim)
    s = jnp.einsum("hrd,hsd->hrs", qh, kh,
                   preferred_element_type=jnp.float32) * scale          # (H, R, R) f32

    # Block-diagonal batch-separation mask built in-kernel: flattened row r belongs to
    # batch (r % N); only same-batch row pairs may attend (== per-batch softmax).
    row = jax.lax.broadcasted_iota(jnp.int32, (R, R), 0)
    col = jax.lax.broadcasted_iota(jnp.int32, (R, R), 1)
    mask = jnp.where((row % n_batch) == (col % n_batch),
                     jnp.float32(0.0), jnp.float32(NEG_INF))
    s = s + mask[None, :, :]

    # ---- numerically-stable softmax (f32 elementwise; EUP approx reciprocal) ----
    m = jnp.max(s, axis=-1, keepdims=True)
    e = jnp.exp(s - m)
    p = e * pl.reciprocal(jnp.sum(e, axis=-1, keepdims=True), approx=True)

    # ---- attention-weighted values ----
    o = jnp.einsum("hrs,hsd->hrd", p.astype(jnp.bfloat16), vh,
                   preferred_element_type=jnp.float32)                  # (H, R, hd)

    # ---- fused output projection: repack heads -> (R, H*hd) = (R, E), one matmul ----
    o2 = jnp.transpose(o, (1, 0, 2)).reshape(R, E)
    bo = ln_ref[0:1, :]
    gamma = ln_ref[1:2, :]
    beta = ln_ref[2:3, :]
    src2 = jnp.dot(o2.astype(jnp.bfloat16), wo_ref[...],
                   preferred_element_type=jnp.float32) + bo             # (R, E)

    # ---- residual (dropout = identity in eval) + LayerNorm over last dim (f32) ----
    y = x + src2
    mean = jnp.mean(y, axis=-1, keepdims=True)
    var = jnp.mean(jnp.square(y - mean), axis=-1, keepdims=True)
    y = (y - mean) * jax.lax.rsqrt(var + LN_EPS)
    out_ref[...] = y * gamma + beta


def san_forward(src_lne, params):
    """src_lne: (L, N, E) float32 — same axis convention as nn.MultiheadAttention."""
    L, N, E = src_lne.shape
    H, hd = NHEAD, HEAD_DIM
    R = L * N

    # (L, N, E) -> (R, E) is a contiguous reshape: no transpose, no extra HBM traffic.
    x2d = src_lne.reshape(R, E)

    # Fused / packed parameters (a few KiB; in a real model precompute once at load).
    w_qkv = jnp.concatenate([params["wq"], params["wk"], params["wv"]],
                            axis=1).astype(jnp.bfloat16)                # (E, 3E)
    b_qkv = jnp.concatenate([params["bq"], params["bk"], params["bv"]],
                            axis=1)                                     # (1, 3E)
    w_o = params["wo"].astype(jnp.bfloat16)                             # (E, E)
    ln_pack = jnp.concatenate([params["bo"], params["gamma"], params["beta"]],
                              axis=0)                                   # (3, E)

    flops = (2 * R * E * 3 * E          # fused QKV projection
             + 2 * H * R * R * hd * 2   # scores + attn @ V
             + 2 * R * E * E)           # fused output projection
    transcendentals = H * R * R + H * R + R     # exp + reciprocal + rsqrt
    bytes_accessed = (4 * R * E                  # x in
                      + 2 * (E * 3 * E + E * E)  # bf16 weights
                      + 4 * (3 * E + 3 * E)      # biases / ln params
                      + 4 * R * E)               # out

    kernel = functools.partial(san_kernel, n_batch=N, nhead=H, head_dim=hd)

    out2d = pl.pallas_call(
        kernel,
        out_shape=jax.ShapeDtypeStruct((R, E), jnp.float32),
        cost_estimate=pl.CostEstimate(flops=flops,
                                      transcendentals=transcendentals,
                                      bytes_accessed=bytes_accessed),
    )(x2d, w_qkv, b_qkv, w_o, ln_pack)

    return out2d.reshape(L, N, E)


def init_params(key, d_model):
    """Deterministic init matching nn.MultiheadAttention / LayerNorm shapes.

    in_proj_weight (3E, E) split into wq/wk/wv; stored TRANSPOSED (E, E) so the
    kernel computes x @ W + b (equivalent to PyTorch x @ W^T + b).
    """
    k = jax.random.split(key, 6)
    bound = 1.0 / math.sqrt(d_model)
    wq = jax.random.uniform(k[0], (d_model, d_model), jnp.float32, -bound, bound)
    wk = jax.random.uniform(k[1], (d_model, d_model), jnp.float32, -bound, bound)
    wv = jax.random.uniform(k[2], (d_model, d_model), jnp.float32, -bound, bound)
    wo = jax.random.uniform(k[3], (d_model, d_model), jnp.float32, -bound, bound)
    bqkv = jax.random.uniform(k[4], (3 * d_model,), jnp.float32, -bound, bound)
    bq, bk, bv = bqkv[:d_model], bqkv[d_model:2 * d_model], bqkv[2 * d_model:]
    bo = jax.random.uniform(k[5], (d_model,), jnp.float32, -bound, bound)
    return {
        "wq": wq.T, "wk": wk.T, "wv": wv.T, "wo": wo.T,
        "bq": bq.reshape(1, d_model),
        "bk": bk.reshape(1, d_model),
        "bv": bv.reshape(1, d_model),
        "bo": bo.reshape(1, d_model),
        "gamma": jnp.ones((1, d_model), jnp.float32),
        "beta": jnp.zeros((1, d_model), jnp.float32),
    }


def san_reference(src_lne, params):
    """Pure-JAX f32 reference matching nn.MultiheadAttention (eval mode) semantics."""
    L, N, E = src_lne.shape
    x = jnp.transpose(src_lne, (1, 0, 2))  # (N, L, E)
    q = x @ params["wq"] + params["bq"]
    k = x @ params["wk"] + params["bk"]
    v = x @ params["wv"] + params["bv"]

    def split(t):  # (N, L, E) -> (N, H, L, hd)
        return t.reshape(N, L, NHEAD, HEAD_DIM).transpose(0, 2, 1, 3)

    qh, kh, vh = split(q), split(k), split(v)
    s = jnp.einsum("nhld,nhmd->nhlm", qh, kh) / math.sqrt(HEAD_DIM)
    p = jax.nn.softmax(s, axis=-1)
    o = jnp.einsum("nhlm,nhmd->nhld", p, vh).transpose(0, 2, 1, 3).reshape(N, L, E)
    src2 = o @ params["wo"] + params["bo"]
    y = x + src2
    mean = jnp.mean(y, axis=-1, keepdims=True)
    var = jnp.mean((y - mean) ** 2, axis=-1, keepdims=True)
    y = (y - mean) / jnp.sqrt(var + LN_EPS)
    y = y * params["gamma"] + params["beta"]
    return jnp.transpose(y, (1, 0, 2))


if __name__ == "__main__":
    key = jax.random.PRNGKey(0)
    k_src, k_par = jax.random.split(key)
    src = jax.random.normal(k_src, (SEQ_LEN, BATCH, D_MODEL), jnp.float32)
    params = init_params(k_par, D_MODEL)

    out = jax.block_until_ready(jax.jit(san_forward)(src, params))
    ref = jax.block_until_ready(san_reference(src, params))

    # tolerance loosened (2e-2) because matmul operands are bf16 and the softmax
    # denominator uses the hardware approximate reciprocal (pl.reciprocal(approx=True)).
    np.testing.assert_allclose(np.asarray(out), np.asarray(ref), rtol=2e-2, atol=2e-2)

    print("KERNEL_OK")
</pallas_src>

<mosaic_0001>
module attributes {stable_mosaic.version = 11 : i64} {
  func.func @san_kernel(%arg0: memref<16x32xf32, #tpu.memory_space<vmem>>, %arg1: memref<32x96xbf16, #tpu.memory_space<vmem>>, %arg2: memref<1x96xf32, #tpu.memory_space<vmem>>, %arg3: memref<32x32xbf16, #tpu.memory_space<vmem>>, %arg4: memref<3x32xf32, #tpu.memory_space<vmem>>, %arg5: memref<16x32xf32, #tpu.memory_space<vmem>>) attributes {dimension_semantics = [], scalar_prefetch = 0 : i64, scratch_operands = 0 : i64, tpu.core_type = #tpu.core_type<tc>} {
    %c0 = arith.constant 0 : index
    %c0_0 = arith.constant 0 : index
    %0 = vector.load %arg0[%c0, %c0_0] : memref<16x32xf32, #tpu.memory_space<vmem>>, vector<16x32xf32>
    %1 = arith.truncf %0 : vector<16x32xf32> to vector<16x32xbf16>
    %c0_1 = arith.constant 0 : index
    %c0_2 = arith.constant 0 : index
    %2 = vector.load %arg1[%c0_1, %c0_2] : memref<32x96xbf16, #tpu.memory_space<vmem>>, vector<32x96xbf16>
    %cst = arith.constant dense<0.000000e+00> : vector<16x96xf32>
    %3 = tpu.matmul %1, %2, %cst {dimension_numbers = #tpu.dot_dimension_numbers<[1], [0], [0], [1], [0, 0, 1, 1], [], []>} : vector<16x32xbf16>, vector<32x96xbf16>, vector<16x96xf32> -> vector<16x96xf32>
    %c0_3 = arith.constant 0 : index
    %c0_4 = arith.constant 0 : index
    %4 = vector.load %arg2[%c0_3, %c0_4] : memref<1x96xf32, #tpu.memory_space<vmem>>, vector<1x96xf32>
    %5 = vector.broadcast %4 : vector<1x96xf32> to vector<16x96xf32>
    %6 = arith.addf %3, %5 : vector<16x96xf32>
    %7 = vector.extract_strided_slice %6 {offsets = [0, 0], sizes = [16, 32], strides = [1, 1]} : vector<16x96xf32> to vector<16x32xf32>
    %8 = vector.extract_strided_slice %6 {offsets = [0, 32], sizes = [16, 32], strides = [1, 1]} : vector<16x96xf32> to vector<16x32xf32>
    %9 = vector.extract_strided_slice %6 {offsets = [0, 64], sizes = [16, 32], strides = [1, 1]} : vector<16x96xf32> to vector<16x32xf32>
    %10 = vector.shape_cast %7 : vector<16x32xf32> to vector<16x4x8xf32>
    %11 = tpu.transpose %10, [1, 0, 2] : vector<16x4x8xf32> -> vector<4x16x8xf32>
    %12 = arith.truncf %11 : vector<4x16x8xf32> to vector<4x16x8xbf16>
    %13 = vector.shape_cast %8 : vector<16x32xf32> to vector<16x4x8xf32>
    %14 = tpu.transpose %13, [1, 0, 2] : vector<16x4x8xf32> -> vector<4x16x8xf32>
    %15 = arith.truncf %14 : vector<4x16x8xf32> to vector<4x16x8xbf16>
    %16 = vector.shape_cast %9 : vector<16x32xf32> to vector<16x4x8xf32>
    %17 = tpu.transpose %16, [1, 0, 2] : vector<16x4x8xf32> -> vector<4x16x8xf32>
    %18 = arith.truncf %17 : vector<4x16x8xf32> to vector<4x16x8xbf16>
    "tpu.trace_start"() <{level = 10 : i32, message = "hrd,hsd->hrs"}> : () -> ()
    %cst_5 = arith.constant dense<0.000000e+00> : vector<4x16x16xf32>
    %19 = tpu.matmul %12, %15, %cst_5 {dimension_numbers = #tpu.dot_dimension_numbers<[2], [2], [1], [1], [0, 0, 0, 1, 1, 1], [0], [0]>} : vector<4x16x8xbf16>, vector<4x16x8xbf16>, vector<4x16x16xf32> -> vector<4x16x16xf32>
    "tpu.trace_stop"() : () -> ()
    %cst_6 = arith.constant 0.353553385 : f32
    %20 = vector.broadcast %cst_6 : f32 to vector<4x16x16xf32>
    %21 = arith.mulf %19, %20 : vector<4x16x16xf32>
    %22 = tpu.iota {dimensions = array<i32: 0>} : vector<16x16xi32>
    %23 = tpu.iota {dimensions = array<i32: 1>} : vector<16x16xi32>
    %c2_i32 = arith.constant 2 : i32
    %c0_i32 = arith.constant 0 : i32
    %24 = arith.cmpi eq, %c2_i32, %c0_i32 : i32
    %c1_i32 = arith.constant 1 : i32
    %25 = arith.select %24, %c1_i32, %c2_i32 : i32
    %26 = vector.broadcast %25 : i32 to vector<16x16xi32>
    %27 = arith.remsi %22, %26 : vector<16x16xi32>
    %c0_i32_7 = arith.constant 0 : i32
    %28 = vector.broadcast %c0_i32_7 : i32 to vector<16x16xi32>
    %29 = arith.cmpi ne, %27, %28 : vector<16x16xi32>
    %c0_i32_8 = arith.constant 0 : i32
    %30 = vector.broadcast %c0_i32_8 : i32 to vector<16x16xi32>
    %31 = arith.cmpi slt, %27, %30 : vector<16x16xi32>
    %c0_i32_9 = arith.constant 0 : i32
    %32 = arith.cmpi slt, %25, %c0_i32_9 : i32
    %33 = vector.broadcast %32 : i1 to vector<16x16xi1>
    %34 = vector.broadcast %33 : vector<16x16xi1> to vector<16x16xi1>
    %35 = arith.xori %31, %34 : vector<16x16xi1>
    %36 = arith.andi %35, %29 : vector<16x16xi1>
    %37 = vector.broadcast %25 : i32 to vector<16x16xi32>
    %38 = arith.addi %27, %37 : vector<16x16xi32>
    %39 = arith.select %36, %38, %27 : vector<16x16xi1>, vector<16x16xi32>
    %c2_i32_10 = arith.constant 2 : i32
    %c0_i32_11 = arith.constant 0 : i32
    %40 = arith.cmpi eq, %c2_i32_10, %c0_i32_11 : i32
    %c1_i32_12 = arith.constant 1 : i32
    %41 = arith.select %40, %c1_i32_12, %c2_i32_10 : i32
    %42 = vector.broadcast %41 : i32 to vector<16x16xi32>
    %43 = arith.remsi %23, %42 : vector<16x16xi32>
    %c0_i32_13 = arith.constant 0 : i32
    %44 = vector.broadcast %c0_i32_13 : i32 to vector<16x16xi32>
    %45 = arith.cmpi ne, %43, %44 : vector<16x16xi32>
    %c0_i32_14 = arith.constant 0 : i32
    %46 = vector.broadcast %c0_i32_14 : i32 to vector<16x16xi32>
    %47 = arith.cmpi slt, %43, %46 : vector<16x16xi32>
    %c0_i32_15 = arith.constant 0 : i32
    %48 = arith.cmpi slt, %41, %c0_i32_15 : i32
    %49 = vector.broadcast %48 : i1 to vector<16x16xi1>
    %50 = vector.broadcast %49 : vector<16x16xi1> to vector<16x16xi1>
    %51 = arith.xori %47, %50 : vector<16x16xi1>
    %52 = arith.andi %51, %45 : vector<16x16xi1>
    %53 = vector.broadcast %41 : i32 to vector<16x16xi32>
    %54 = arith.addi %43, %53 : vector<16x16xi32>
    %55 = arith.select %52, %54, %43 : vector<16x16xi1>, vector<16x16xi32>
    %56 = arith.cmpi eq, %39, %55 : vector<16x16xi32>
    %cst_16 = arith.constant 0.000000e+00 : f32
    %cst_17 = arith.constant -1.000000e+30 : f32
    %57 = vector.broadcast %cst_16 : f32 to vector<16x16xf32>
    %58 = vector.broadcast %cst_17 : f32 to vector<16x16xf32>
    %59 = arith.select %56, %57, %58 : vector<16x16xi1>, vector<16x16xf32>
    %60 = vector.shape_cast %59 : vector<16x16xf32> to vector<1x16x16xf32>
    %61 = vector.broadcast %60 : vector<1x16x16xf32> to vector<4x16x16xf32>
    %62 = arith.addf %21, %61 : vector<4x16x16xf32>
    %cst_18 = arith.constant dense<0xFF800000> : vector<4x16xf32>
    %63 = vector.multi_reduction <maximumf>, %62, %cst_18 [2] : vector<4x16x16xf32> to vector<4x16xf32>
    %64 = vector.shape_cast %63 : vector<4x16xf32> to vector<4x16x1xf32>
    %65 = vector.broadcast %64 : vector<4x16x1xf32> to vector<4x16x16xf32>
    %66 = arith.subf %62, %65 : vector<4x16x16xf32>
    %67 = math.exp %66 : vector<4x16x16xf32>
    %cst_19 = arith.constant dense<0.000000e+00> : vector<4x16xf32>
    %68 = vector.multi_reduction <add>, %67, %cst_19 [2] : vector<4x16x16xf32> to vector<4x16xf32>
    %69 = vector.shape_cast %68 : vector<4x16xf32> to vector<4x16x1xf32>
    %70 = tpu.reciprocal %69 {approx = true} : vector<4x16x1xf32> -> vector<4x16x1xf32>
    %71 = vector.broadcast %70 : vector<4x16x1xf32> to vector<4x16x16xf32>
    %72 = arith.mulf %67, %71 : vector<4x16x16xf32>
    %73 = arith.truncf %72 : vector<4x16x16xf32> to vector<4x16x16xbf16>
    "tpu.trace_start"() <{level = 10 : i32, message = "hrs,hsd->hrd"}> : () -> ()
    %cst_20 = arith.constant dense<0.000000e+00> : vector<4x16x8xf32>
    %74 = tpu.matmul %73, %18, %cst_20 {dimension_numbers = #tpu.dot_dimension_numbers<[2], [1], [1], [2], [0, 0, 0, 1, 1, 2], [0], [0]>} : vector<4x16x16xbf16>, vector<4x16x8xbf16>, vector<4x16x8xf32> -> vector<4x16x8xf32>
    "tpu.trace_stop"() : () -> ()
    %75 = tpu.transpose %74, [1, 0, 2] : vector<4x16x8xf32> -> vector<16x4x8xf32>
    %76 = vector.shape_cast %75 : vector<16x4x8xf32> to vector<16x32xf32>
    %c0_21 = arith.constant 0 : index
    %c0_22 = arith.constant 0 : index
    %77 = vector.load %arg4[%c0_21, %c0_22] : memref<3x32xf32, #tpu.memory_space<vmem>>, vector<1x32xf32>
    %c1 = arith.constant 1 : index
    %c0_23 = arith.constant 0 : index
    %78 = vector.load %arg4[%c1, %c0_23] : memref<3x32xf32, #tpu.memory_space<vmem>>, vector<1x32xf32>
    %c2 = arith.constant 2 : index
    %c0_24 = arith.constant 0 : index
    %79 = vector.load %arg4[%c2, %c0_24] : memref<3x32xf32, #tpu.memory_space<vmem>>, vector<1x32xf32>
    %80 = arith.truncf %76 : vector<16x32xf32> to vector<16x32xbf16>
    %c0_25 = arith.constant 0 : index
    %c0_26 = arith.constant 0 : index
    %81 = vector.load %arg3[%c0_25, %c0_26] : memref<32x32xbf16, #tpu.memory_space<vmem>>, vector<32x32xbf16>
    %cst_27 = arith.constant dense<0.000000e+00> : vector<16x32xf32>
    %82 = tpu.matmul %80, %81, %cst_27 {dimension_numbers = #tpu.dot_dimension_numbers<[1], [0], [0], [1], [0, 0, 1, 1], [], []>} : vector<16x32xbf16>, vector<32x32xbf16>, vector<16x32xf32> -> vector<16x32xf32>
    %83 = vector.broadcast %77 : vector<1x32xf32> to vector<16x32xf32>
    %84 = arith.addf %82, %83 : vector<16x32xf32>
    %85 = arith.addf %0, %84 : vector<16x32xf32>
    %cst_28 = arith.constant dense<0.000000e+00> : vector<16xf32>
    %86 = vector.multi_reduction <add>, %85, %cst_28 [1] : vector<16x32xf32> to vector<16xf32>
    %87 = vector.shape_cast %86 : vector<16xf32> to vector<16x1xf32>
    %cst_29 = arith.constant 3.200000e+01 : f32
    %88 = vector.broadcast %cst_29 : f32 to vector<16x1xf32>
    %89 = arith.divf %87, %88 : vector<16x1xf32>
    %90 = vector.broadcast %89 : vector<16x1xf32> to vector<16x32xf32>
    %91 = arith.subf %85, %90 : vector<16x32xf32>
    %92 = arith.mulf %91, %91 : vector<16x32xf32>
    %cst_30 = arith.constant dense<0.000000e+00> : vector<16xf32>
    %93 = vector.multi_reduction <add>, %92, %cst_30 [1] : vector<16x32xf32> to vector<16xf32>
    %94 = vector.shape_cast %93 : vector<16xf32> to vector<16x1xf32>
    %cst_31 = arith.constant 3.200000e+01 : f32
    %95 = vector.broadcast %cst_31 : f32 to vector<16x1xf32>
    %96 = arith.divf %94, %95 : vector<16x1xf32>
    %97 = vector.broadcast %89 : vector<16x1xf32> to vector<16x32xf32>
    %98 = arith.subf %85, %97 : vector<16x32xf32>
    %cst_32 = arith.constant 9.99999974E-6 : f32
    %99 = vector.broadcast %cst_32 : f32 to vector<16x1xf32>
    %100 = arith.addf %96, %99 : vector<16x1xf32>
    %101 = math.rsqrt %100 : vector<16x1xf32>
    %102 = vector.broadcast %101 : vector<16x1xf32> to vector<16x32xf32>
    %103 = arith.mulf %98, %102 : vector<16x32xf32>
    %104 = vector.broadcast %78 : vector<1x32xf32> to vector<16x32xf32>
    %105 = arith.mulf %103, %104 : vector<16x32xf32>
    %106 = vector.broadcast %79 : vector<1x32xf32> to vector<16x32xf32>
    %107 = arith.addf %105, %106 : vector<16x32xf32>
    %c0_33 = arith.constant 0 : index
    %c0_34 = arith.constant 0 : index
    %108 = vector.load %arg5[%c0_33, %c0_34] : memref<16x32xf32, #tpu.memory_space<vmem>>, vector<16x32xf32>
    tpu.vector_store %arg5[%c0_33, %c0_34], %107 {strides = array<i32>} : memref<16x32xf32, #tpu.memory_space<vmem>>, vector<16x32xf32>,
    return
  }
}

</mosaic_0001>

<llo_original>
// kernel: san_forward.1
$region0: #{san_forward.1}
  #allocation0 [shape = 'u32[]', space=smem, size = 0x4, offset = 0x4, fixed_abs, tag = 'smem constant byte address 0x4 - core index']
  #allocation1 [shape = 'u32[144,128]{1,0:T(1,128)}', space=vmem, size = 0x12000, scoped, tag = 'internal scratch']
  %s0 = inlined_call_operand.vmem [shape: f32[16,32], index: 0, kind: input, shape index: {}]
  %s1 = inlined_call_operand.vmem [shape: bf16[32,96], index: 1, kind: input, shape index: {}]
  %s2 = inlined_call_operand.vmem [shape: f32[1,96], index: 2, kind: input, shape index: {}]
  %s3 = inlined_call_operand.vmem [shape: bf16[32,32], index: 3, kind: input, shape index: {}]
  %s4 = inlined_call_operand.vmem [shape: f32[3,32], index: 4, kind: input, shape index: {}]
  %s5 = inlined_call_operand.hbm [shape: f32[16,32], index: 5, kind: output, shape index: {}]
  %s6 = sld [smem:[#allocation0]]
  $region30: #{san_forward.1} parent=0
    _
  %s8 = ssub.s32 1, %s6
  %s9 = scalar_select 0, %s8, %s6
  $region1: #{san_forward.1} parent=0
    #allocation2 [shape = 'u8[8192]{0}', space=vmem, size = 0x2000, scoped, tag = 'output window, operand 0, single buffered']
    #allocation3 [shape = 's32[1]{0}', space=sflag, size = 0x4, scoped, tag = 'scoped memory for san_forward.1']
    %10 = vsyncpa [#allocation3], 0
    // Predicated region
    $region2: #{san_forward.1} parent=1 // pred_check
      _
    $region3: #{san_forward.1} parent=1 // pred_check_branch
      %12 = sbr.rel (0) target = $region5
    $region4: #{san_forward.1} parent=1 // pred_region
      _
    $region5: #{san_forward.1} parent=1 // pred_fallthru
      _
    // Predicated region
    $region6: #{san_forward.1} parent=1 // pred_check
      _
    $region7: #{san_forward.1} parent=1 // pred_check_branch
      %14 = sbr.rel (0) target = $region9
    $region8: #{san_forward.1} parent=1 // pred_region
      _
    $region9: #{san_forward.1} parent=1 // pred_fallthru
      _
    // Predicated region
    $region10: #{san_forward.1} parent=1 // pred_check
      _
    $region11: #{san_forward.1} parent=1 // pred_check_branch
      %16 = sbr.rel (0) target = $region13
    $region12: #{san_forward.1} parent=1 // pred_region
      _
    $region13: #{san_forward.1} parent=1 // pred_fallthru
      _
    // Predicated region
    $region14: #{san_forward.1} parent=1 // pred_check
      _
    $region15: #{san_forward.1} parent=1 // pred_check_branch
      %18 = sbr.rel (0) target = $region17
    $region16: #{san_forward.1} parent=1 // pred_region
      _
    $region17: #{san_forward.1} parent=1 // pred_fallthru
      _
    // Predicated region
    $region18: #{san_forward.1} parent=1 // pred_check
      _
    $region19: #{san_forward.1} parent=1 // pred_check_branch
      %20 = sbr.rel (0) target = $region21
    $region20: #{san_forward.1} parent=1 // pred_region
      _
    $region21: #{san_forward.1} parent=1 // pred_fallthru
      _
    %v22 = vld [vmem:[%s0] sm:$0xff]
    %v23 = vld [vmem:[%s0 + $0x8] sm:$0xff]
    %v24 = vpack.c.bf16 %v23, %v22
    %v25 = vld [vmem:[%s1] sm:$0xf]
    %v26 = vld [vmem:[%s1 + $0x4] sm:$0xf]
    %v27 = vld [vmem:[%s1 + $0x8] sm:$0xf]
    %v28 = vld [vmem:[%s1 + $0xc] sm:$0xf]
    %v29 = vld [vmem:[%s2] sm:$0x1]
    %v31 = vlaneseq
    %v32 = vshrl.u32 %v31, 7
    %v33 = vsub.s32 0, %v32
    %v34 = vrot.slane %v29, %v33
    %v40 = vunpack.c.l.b16 %v25
    %v41 = vunpack.c.l.b16 %v26
    %v42 = vunpack.c.l.b16 %v27
    %v43 = vunpack.c.l.b16 %v28
    %v44 = vpack.c.b16 %v41, %v40
    %v45 = vpack.c.b16 %v43, %v42
    %vm48 = vcmask 261120
    %v50 = vsel %vm48, %v24, 0
    %52 = vmatprep.subr.bf16.mxu0 0
    %53 = vmatpush1.bf16.msra.mxu0 0
    %54 = vmatprep.subr.bf16.mxu0 0
    %55 = vmatpush1.bf16.msra.mxu0 0
    %56 = vmatprep.subr.bf16.mxu0 0
    %57 = vmatpush1.bf16.msra.mxu0 0
    %58 = vmatprep.subr.bf16.mxu0 0
    %59 = vmatpush1.bf16.msra.mxu0 0
    %60 = vmatprep.subr.bf16.mxu0 0
    %61 = vmatpush1.bf16.msra.mxu0 0
    %62 = vmatprep.subr.bf16.mxu0 0
    %63 = vmatpush1.bf16.msra.mxu0 0
    %64 = vmatprep.subr.bf16.mxu0 0
    %65 = vmatpush1.bf16.msra.mxu0 %v45
    %66 = vmatprep.subr.bf16.mxu0 0
    %67 = vmatpush1.bf16.msra.mxu0 %v44
    %68 = vmatprep.subr.bf16.mxu0 0
    %69 = vmatpush2.bf16.msra.mxu0 0
    %70 = vmatprep.subr.bf16.mxu0 0
    %71 = vmatpush2.bf16.msra.mxu0 0
    %72 = vmatprep.subr.bf16.mxu0 0
    %73 = vmatpush2.bf16.msra.mxu0 0
    %74 = vmatprep.subr.bf16.mxu0 0
    %75 = vmatpush2.bf16.msra.mxu0 0
    %76 = vmatprep.subr.bf16.mxu0 0
    %77 = vmatpush2.bf16.msra.mxu0 0
    %78 = vmatprep.subr.bf16.mxu0 0
    %79 = vmatpush2.bf16.msra.mxu0 0
    %80 = vmatprep.subr.bf16.mxu0 0
    %81 = vmatpush2.bf16.msra.mxu0 0
    %82 = vmatprep.subr.bf16.mxu0 0
    %83 = vmatpush2.bf16.msra.mxu0 0
    %84 = vmatprep.mubr.bf16.mxu0 0
    %85 = vmatmul.mubr.bf16.gmra.mxu0 %v50
    %v86 = vpop.f32.mrf.mxu0
    %v87 = vadd.f32 %v34, %v86
    %v88 = vpop.f32.mrf.mxu0
    %v89 = vpop.f32.mrf.mxu0
    %v90 = vadd.f32 %v34, %v89
    %v91 = vpop.f32.mrf.mxu0
    %92 = vdwg.mxu0
    %95 = vrot.lane.b32.xlu0 %v87, 120
    %v96 = vpop.permute.xlu0 %95
    %97 = vrot.lane.b32.xlu0 %v90, 120
    %v98 = vpop.permute.xlu0 %97
    %101 = vrot.lane.b32.xlu0 %v87, 112
    %v102 = vpop.permute.xlu0 %101
    %103 = vrot.lane.b32.xlu0 %v90, 112
    %v104 = vpop.permute.xlu0 %103
    %107 = vrot.lane.b32.xlu0 %v87, 104
    %v108 = vpop.permute.xlu0 %107
    %109 = vrot.lane.b32.xlu0 %v90, 104
    %v110 = vpop.permute.xlu0 %109
    %v113 = vcombine.low %v87, %v102
    %v114 = vcombine.high %v87, %v102
    %v116 = vunpack.c.l.s4 1983009808
    %v117 = vunpack.c.0.s8 %v116
    %v118 = vlaneseq
    %v119 = vshrl.u32 %v118, 7
    %v120 = vsub.s32 %v117, %v119
    %v121 = vrot.slane %v113, %v120
    %v123 = vunpack.c.l.s4 1983009808
    %v124 = vunpack.c.0.s8 %v123
    %v125 = vlaneseq
    %v126 = vshrl.u32 %v125, 7
    %v127 = vsub.s32 %v124, %v126
    %v128 = vrot.slane %v114, %v127
    %v129 = vcombine.low %v96, %v108
    %v130 = vcombine.high %v96, %v108
    %v132 = vunpack.c.l.s4 1983009808
    %v133 = vunpack.c.0.s8 %v132
    %v134 = vlaneseq
    %v135 = vshrl.u32 %v134, 7
    %v136 = vsub.s32 %v133, %v135
    %v137 = vrot.slane %v129, %v136
    %v139 = vunpack.c.l.s4 1983009808
    %v140 = vunpack.c.0.s8 %v139
    %v141 = vlaneseq
    %v142 = vshrl.u32 %v141, 7
    %v143 = vsub.s32 %v140, %v142
    %v144 = vrot.slane %v130, %v143
    %v145 = vcombine.low %v121, %v137
    %v146 = vcombine.high %v121, %v137
    %v148 = vunpack.c.l.s4 1934713408
    %v149 = vunpack.c.0.s8 %v148
    %v150 = vlaneseq
    %v151 = vshrl.u32 %v150, 7
    %v152 = vsub.s32 %v149, %v151
    %v153 = vrot.slane %v145, %v152
    %v155 = vunpack.c.l.s4 1934713408
    %v156 = vunpack.c.0.s8 %v155
    %v157 = vlaneseq
    %v158 = vshrl.u32 %v157, 7
    %v159 = vsub.s32 %v156, %v158
    %v160 = vrot.slane %v146, %v159
    %v161 = vcombine.low %v128, %v144
    %v162 = vcombine.high %v128, %v144
    %v164 = vunpack.c.l.s4 1934713408
    %v165 = vunpack.c.0.s8 %v164
    %v166 = vlaneseq
    %v167 = vshrl.u32 %v166, 7
    %v168 = vsub.s32 %v165, %v167
    %v169 = vrot.slane %v161, %v168
    %v171 = vunpack.c.l.s4 1934713408
    %v172 = vunpack.c.0.s8 %v171
    %v173 = vlaneseq
    %v174 = vshrl.u32 %v173, 7
    %v175 = vsub.s32 %v172, %v174
    %v176 = vrot.slane %v162, %v175
    %v177 = vcombine.high %v153, 0.0
    %v178 = vcombine.high %v160, 0.0
    %v179 = vcombine.high %v169, 0.0
    %v180 = vcombine.high %v176, 0.0
    %v181 = vcombine.low %v90, %v104
    %v182 = vcombine.high %v90, %v104
    %v184 = vunpack.c.l.s4 1983009808
    %v185 = vunpack.c.0.s8 %v184
    %v186 = vlaneseq
    %v187 = vshrl.u32 %v186, 7
    %v188 = vsub.s32 %v185, %v187
    %v189 = vrot.slane %v181, %v188
    %v191 = vunpack.c.l.s4 1983009808
    %v192 = vunpack.c.0.s8 %v191
    %v193 = vlaneseq
    %v194 = vshrl.u32 %v193, 7
    %v195 = vsub.s32 %v192, %v194
    %v196 = vrot.slane %v182, %v195
    %v197 = vcombine.low %v98, %v110
    %v198 = vcombine.high %v98, %v110
    %v200 = vunpack.c.l.s4 1983009808
    %v201 = vunpack.c.0.s8 %v200
    %v202 = vlaneseq
    %v203 = vshrl.u32 %v202, 7
    %v204 = vsub.s32 %v201, %v203
    %v205 = vrot.slane %v197, %v204
    %v207 = vunpack.c.l.s4 1983009808
    %v208 = vunpack.c.0.s8 %v207
    %v209 = vlaneseq
    %v210 = vshrl.u32 %v209, 7
    %v211 = vsub.s32 %v208, %v210
    %v212 = vrot.slane %v198, %v211
    %v213 = vcombine.low %v189, %v205
    %v214 = vcombine.high %v189, %v205
    %v216 = vunpack.c.l.s4 1934713408
    %v217 = vunpack.c.0.s8 %v216
    %v218 = vlaneseq
    %v219 = vshrl.u32 %v218, 7
    %v220 = vsub.s32 %v217, %v219
    %v221 = vrot.slane %v213, %v220
    %v223 = vunpack.c.l.s4 1934713408
    %v224 = vunpack.c.0.s8 %v223
    %v225 = vlaneseq
    %v226 = vshrl.u32 %v225, 7
    %v227 = vsub.s32 %v224, %v226
    %v228 = vrot.slane %v214, %v227
    %v229 = vcombine.low %v196, %v212
    %v230 = vcombine.high %v196, %v212
    %v232 = vunpack.c.l.s4 1934713408
    %v233 = vunpack.c.0.s8 %v232
    %v234 = vlaneseq
    %v235 = vshrl.u32 %v234, 7
    %v236 = vsub.s32 %v233, %v235
    %v237 = vrot.slane %v229, %v236
    %v239 = vunpack.c.l.s4 1934713408
    %v240 = vunpack.c.0.s8 %v239
    %v241 = vlaneseq
    %v242 = vshrl.u32 %v241, 7
    %v243 = vsub.s32 %v240, %v242
    %v244 = vrot.slane %v230, %v243
    %v245 = vcombine.high %v221, 0.0
    %v246 = vcombine.high %v228, 0.0
    %v247 = vcombine.high %v237, 0.0
    %v248 = vcombine.high %v244, 0.0
    %v249 = vcombine.low %v153, %v160
    %v251 = vunpack.c.l.s4 1983009808
    %v252 = vunpack.c.0.s8 %v251
    %v253 = vlaneseq
    %v254 = vshrl.u32 %v253, 7
    %v255 = vsub.s32 %v252, %v254
    %v256 = vrot.slane %v249, %v255
    %v257 = vcombine.low %v177, %v178
    %v259 = vunpack.c.l.s4 1983009808
    %v260 = vunpack.c.0.s8 %v259
    %v261 = vlaneseq
    %v262 = vshrl.u32 %v261, 7
    %v263 = vsub.s32 %v260, %v262
    %v264 = vrot.slane %v257, %v263
    %v265 = vcombine.low %v169, %v176
    %v267 = vunpack.c.l.s4 1983009808
    %v268 = vunpack.c.0.s8 %v267
    %v269 = vlaneseq
    %v270 = vshrl.u32 %v269, 7
    %v271 = vsub.s32 %v268, %v270
    %v272 = vrot.slane %v265, %v271
    %v273 = vcombine.low %v179, %v180
    %v275 = vunpack.c.l.s4 1983009808
    %v276 = vunpack.c.0.s8 %v275
    %v277 = vlaneseq
    %v278 = vshrl.u32 %v277, 7
    %v279 = vsub.s32 %v276, %v278
    %v280 = vrot.slane %v273, %v279
    %v281 = vcombine.low %v256, %v264
    %v282 = vcombine.high %v256, %v264
    %v284 = vunpack.c.l.s4 1934713408
    %v285 = vunpack.c.0.s8 %v284
    %v286 = vlaneseq
    %v287 = vshrl.u32 %v286, 7
    %v288 = vsub.s32 %v285, %v287
    %v289 = vrot.slane %v281, %v288
    %v291 = vunpack.c.l.s4 1934713408
    %v292 = vunpack.c.0.s8 %v291
    %v293 = vlaneseq
    %v294 = vshrl.u32 %v293, 7
    %v295 = vsub.s32 %v292, %v294
    %v296 = vrot.slane %v282, %v295
    %v297 = vcombine.low %v272, %v280
    %v298 = vcombine.high %v272, %v280
    %v300 = vunpack.c.l.s4 1934713408
    %v301 = vunpack.c.0.s8 %v300
    %v302 = vlaneseq
    %v303 = vshrl.u32 %v302, 7
    %v304 = vsub.s32 %v301, %v303
    %v305 = vrot.slane %v297, %v304
    %v307 = vunpack.c.l.s4 1934713408
    %v308 = vunpack.c.0.s8 %v307
    %v309 = vlaneseq
    %v310 = vshrl.u32 %v309, 7
    %v311 = vsub.s32 %v308, %v310
    %v312 = vrot.slane %v298, %v311
    %v313 = vcombine.low %v289, %v305
    %v314 = vcombine.high %v289, %v305
    %v315 = vcombine.low %v296, %v312
    %v316 = vcombine.high %v296, %v312
    %v317 = vcombine.low %v221, %v228
    %v319 = vunpack.c.l.s4 1983009808
    %v320 = vunpack.c.0.s8 %v319
    %v321 = vlaneseq
    %v322 = vshrl.u32 %v321, 7
    %v323 = vsub.s32 %v320, %v322
    %v324 = vrot.slane %v317, %v323
    %v325 = vcombine.low %v245, %v246
    %v327 = vunpack.c.l.s4 1983009808
    %v328 = vunpack.c.0.s8 %v327
    %v329 = vlaneseq
    %v330 = vshrl.u32 %v329, 7
    %v331 = vsub.s32 %v328, %v330
    %v332 = vrot.slane %v325, %v331
    %v333 = vcombine.low %v237, %v244
    %v335 = vunpack.c.l.s4 1983009808
    %v336 = vunpack.c.0.s8 %v335
    %v337 = vlaneseq
    %v338 = vshrl.u32 %v337, 7
    %v339 = vsub.s32 %v336, %v338
    %v340 = vrot.slane %v333, %v339
    %v341 = vcombine.low %v247, %v248
    %v343 = vunpack.c.l.s4 1983009808
    %v344 = vunpack.c.0.s8 %v343
    %v345 = vlaneseq
    %v346 = vshrl.u32 %v345, 7
    %v347 = vsub.s32 %v344, %v346
    %v348 = vrot.slane %v341, %v347
    %v349 = vcombine.low %v324, %v332
    %v350 = vcombine.high %v324, %v332
    %v352 = vunpack.c.l.s4 1934713408
    %v353 = vunpack.c.0.s8 %v352
    %v354 = vlaneseq
    %v355 = vshrl.u32 %v354, 7
    %v356 = vsub.s32 %v353, %v355
    %v357 = vrot.slane %v349, %v356
    %v359 = vunpack.c.l.s4 1934713408
    %v360 = vunpack.c.0.s8 %v359
    %v361 = vlaneseq
    %v362 = vshrl.u32 %v361, 7
    %v363 = vsub.s32 %v360, %v362
    %v364 = vrot.slane %v350, %v363
    %v365 = vcombine.low %v340, %v348
    %v366 = vcombine.high %v340, %v348
    %v368 = vunpack.c.l.s4 1934713408
    %v369 = vunpack.c.0.s8 %v368
    %v370 = vlaneseq
    %v371 = vshrl.u32 %v370, 7
    %v372 = vsub.s32 %v369, %v371
    %v373 = vrot.slane %v365, %v372
    %v375 = vunpack.c.l.s4 1934713408
    %v376 = vunpack.c.0.s8 %v375
    %v377 = vlaneseq
    %v378 = vshrl.u32 %v377, 7
    %v379 = vsub.s32 %v376, %v378
    %v380 = vrot.slane %v366, %v379
    %v381 = vcombine.low %v357, %v373
    %v382 = vcombine.high %v357, %v373
    %v383 = vcombine.low %v364, %v380
    %v384 = vcombine.high %v364, %v380
    %v385 = vpack.c.bf16 %v381, %v313
    %v386 = vpack.c.bf16 %v382, %v314
    %v387 = vpack.c.bf16 %v383, %v315
    %v388 = vpack.c.bf16 %v384, %v316
    %389 = vrot.lane.b32.xlu0 %v87, 96
    %v390 = vpop.permute.xlu0 %389
    %391 = vrot.lane.b32.xlu0 %v90, 96
    %v392 = vpop.permute.xlu0 %391
    %393 = vrot.lane.b32.xlu0 %v96, 96
    %v394 = vpop.permute.xlu0 %393
    %395 = vrot.lane.b32.xlu0 %v98, 96
    %v396 = vpop.permute.xlu0 %395
    %397 = vrot.lane.b32.xlu0 %v102, 96
    %v398 = vpop.permute.xlu0 %397
    %399 = vrot.lane.b32.xlu0 %v104, 96
    %v400 = vpop.permute.xlu0 %399
    %401 = vrot.lane.b32.xlu0 %v108, 96
    %v402 = vpop.permute.xlu0 %401
    %403 = vrot.lane.b32.xlu0 %v110, 96
    %v404 = vpop.permute.xlu0 %403
    %v413 = vcombine.low %v390, %v398
    %v414 = vcombine.high %v390, %v398
    %v416 = vunpack.c.l.s4 1983009808
    %v417 = vunpack.c.0.s8 %v416
    %v418 = vlaneseq
    %v419 = vshrl.u32 %v418, 7
    %v420 = vsub.s32 %v417, %v419
    %v421 = vrot.slane %v413, %v420
    %v423 = vunpack.c.l.s4 1983009808
    %v424 = vunpack.c.0.s8 %v423
    %v425 = vlaneseq
    %v426 = vshrl.u32 %v425, 7
    %v427 = vsub.s32 %v424, %v426
    %v428 = vrot.slane %v414, %v427
    %v429 = vcombine.low %v394, %v402
    %v430 = vcombine.high %v394, %v402
    %v432 = vunpack.c.l.s4 1983009808
    %v433 = vunpack.c.0.s8 %v432
    %v434 = vlaneseq
    %v435 = vshrl.u32 %v434, 7
    %v436 = vsub.s32 %v433, %v435
    %v437 = vrot.slane %v429, %v436
    %v439 = vunpack.c.l.s4 1983009808
    %v440 = vunpack.c.0.s8 %v439
    %v441 = vlaneseq
    %v442 = vshrl.u32 %v441, 7
    %v443 = vsub.s32 %v440, %v442
    %v444 = vrot.slane %v430, %v443
    %v445 = vcombine.low %v421, %v437
    %v446 = vcombine.high %v421, %v437
    %v448 = vunpack.c.l.s4 1934713408
    %v449 = vunpack.c.0.s8 %v448
    %v450 = vlaneseq
    %v451 = vshrl.u32 %v450, 7
    %v452 = vsub.s32 %v449, %v451
    %v453 = vrot.slane %v445, %v452
    %v455 = vunpack.c.l.s4 1934713408
    %v456 = vunpack.c.0.s8 %v455
    %v457 = vlaneseq
    %v458 = vshrl.u32 %v457, 7
    %v459 = vsub.s32 %v456, %v458
    %v460 = vrot.slane %v446, %v459
    %v461 = vcombine.low %v428, %v444
    %v462 = vcombine.high %v428, %v444
    %v464 = vunpack.c.l.s4 1934713408
    %v465 = vunpack.c.0.s8 %v464
    %v466 = vlaneseq
    %v467 = vshrl.u32 %v466, 7
    %v468 = vsub.s32 %v465, %v467
    %v469 = vrot.slane %v461, %v468
    %v471 = vunpack.c.l.s4 1934713408
    %v472 = vunpack.c.0.s8 %v471
    %v473 = vlaneseq
    %v474 = vshrl.u32 %v473, 7
    %v475 = vsub.s32 %v472, %v474
    %v476 = vrot.slane %v462, %v475
    %v477 = vcombine.high %v453, 0.0
    %v478 = vcombine.high %v460, 0.0
    %v479 = vcombine.high %v469, 0.0
    %v480 = vcombine.high %v476, 0.0
    %v481 = vcombine.low %v392, %v400
    %v482 = vcombine.high %v392, %v400
    %v484 = vunpack.c.l.s4 1983009808
    %v485 = vunpack.c.0.s8 %v484
    %v486 = vlaneseq
    %v487 = vshrl.u32 %v486, 7
    %v488 = vsub.s32 %v485, %v487
    %v489 = vrot.slane %v481, %v488
    %v491 = vunpack.c.l.s4 1983009808
    %v492 = vunpack.c.0.s8 %v491
    %v493 = vlaneseq
    %v494 = vshrl.u32 %v493, 7
    %v495 = vsub.s32 %v492, %v494
    %v496 = vrot.slane %v482, %v495
    %v497 = vcombine.low %v396, %v404
    %v498 = vcombine.high %v396, %v404
    %v500 = vunpack.c.l.s4 1983009808
    %v501 = vunpack.c.0.s8 %v500
    %v502 = vlaneseq
    %v503 = vshrl.u32 %v502, 7
    %v504 = vsub.s32 %v501, %v503
    %v505 = vrot.slane %v497, %v504
    %v507 = vunpack.c.l.s4 1983009808
    %v508 = vunpack.c.0.s8 %v507
    %v509 = vlaneseq
    %v510 = vshrl.u32 %v509, 7
    %v511 = vsub.s32 %v508, %v510
    %v512 = vrot.slane %v498, %v511
    %v513 = vcombine.low %v489, %v505
    %v514 = vcombine.high %v489, %v505
    %v516 = vunpack.c.l.s4 1934713408
    %v517 = vunpack.c.0.s8 %v516
    %v518 = vlaneseq
    %v519 = vshrl.u32 %v518, 7
    %v520 = vsub.s32 %v517, %v519
    %v521 = vrot.slane %v513, %v520
    %v523 = vunpack.c.l.s4 1934713408
    %v524 = vunpack.c.0.s8 %v523
    %v525 = vlaneseq
    %v526 = vshrl.u32 %v525, 7
    %v527 = vsub.s32 %v524, %v526
    %v528 = vrot.slane %v514, %v527
    %v529 = vcombine.low %v496, %v512
    %v530 = vcombine.high %v496, %v512
    %v532 = vunpack.c.l.s4 1934713408
    %v533 = vunpack.c.0.s8 %v532
    %v534 = vlaneseq
    %v535 = vshrl.u32 %v534, 7
    %v536 = vsub.s32 %v533, %v535
    %v537 = vrot.slane %v529, %v536
    %v539 = vunpack.c.l.s4 1934713408
    %v540 = vunpack.c.0.s8 %v539
    %v541 = vlaneseq
    %v542 = vshrl.u32 %v541, 7
    %v543 = vsub.s32 %v540, %v542
    %v544 = vrot.slane %v530, %v543
    %v545 = vcombine.high %v521, 0.0
    %v546 = vcombine.high %v528, 0.0
    %v547 = vcombine.high %v537, 0.0
    %v548 = vcombine.high %v544, 0.0
    %v549 = vcombine.low %v453, %v460
    %v551 = vunpack.c.l.s4 1983009808
    %v552 = vunpack.c.0.s8 %v551
    %v553 = vlaneseq
    %v554 = vshrl.u32 %v553, 7
    %v555 = vsub.s32 %v552, %v554
    %v556 = vrot.slane %v549, %v555
    %v557 = vcombine.low %v477, %v478
    %v559 = vunpack.c.l.s4 1983009808
    %v560 = vunpack.c.0.s8 %v559
    %v561 = vlaneseq
    %v562 = vshrl.u32 %v561, 7
    %v563 = vsub.s32 %v560, %v562
    %v564 = vrot.slane %v557, %v563
    %v565 = vcombine.low %v469, %v476
    %v567 = vunpack.c.l.s4 1983009808
    %v568 = vunpack.c.0.s8 %v567
    %v569 = vlaneseq
    %v570 = vshrl.u32 %v569, 7
    %v571 = vsub.s32 %v568, %v570
    %v572 = vrot.slane %v565, %v571
    %v573 = vcombine.low %v479, %v480
    %v575 = vunpack.c.l.s4 1983009808
    %v576 = vunpack.c.0.s8 %v575
    %v577 = vlaneseq
    %v578 = vshrl.u32 %v577, 7
    %v579 = vsub.s32 %v576, %v578
    %v580 = vrot.slane %v573, %v579
    %v581 = vcombine.low %v556, %v564
    %v582 = vcombine.high %v556, %v564
    %v584 = vunpack.c.l.s4 1934713408
    %v585 = vunpack.c.0.s8 %v584
    %v586 = vlaneseq
    %v587 = vshrl.u32 %v586, 7
    %v588 = vsub.s32 %v585, %v587
    %v589 = vrot.slane %v581, %v588
    %v591 = vunpack.c.l.s4 1934713408
    %v592 = vunpack.c.0.s8 %v591
    %v593 = vlaneseq
    %v594 = vshrl.u32 %v593, 7
    %v595 = vsub.s32 %v592, %v594
    %v596 = vrot.slane %v582, %v595
    %v597 = vcombine.low %v572, %v580
    %v598 = vcombine.high %v572, %v580
    %v600 = vunpack.c.l.s4 1934713408
    %v601 = vunpack.c.0.s8 %v600
    %v602 = vlaneseq
    %v603 = vshrl.u32 %v602, 7
    %v604 = vsub.s32 %v601, %v603
    %v605 = vrot.slane %v597, %v604
    %v607 = vunpack.c.l.s4 1934713408
    %v608 = vunpack.c.0.s8 %v607
    %v609 = vlaneseq
    %v610 = vshrl.u32 %v609, 7
    %v611 = vsub.s32 %v608, %v610
    %v612 = vrot.slane %v598, %v611
    %v613 = vcombine.low %v589, %v605
    %v614 = vcombine.high %v589, %v605
    %v615 = vcombine.low %v596, %v612
    %v616 = vcombine.high %v596, %v612
    %v617 = vcombine.low %v521, %v528
    %v619 = vunpack.c.l.s4 1983009808
    %v620 = vunpack.c.0.s8 %v619
    %v621 = vlaneseq
    %v622 = vshrl.u32 %v621, 7
    %v623 = vsub.s32 %v620, %v622
    %v624 = vrot.slane %v617, %v623
    %v625 = vcombine.low %v545, %v546
    %v627 = vunpack.c.l.s4 1983009808
    %v628 = vunpack.c.0.s8 %v627
    %v629 = vlaneseq
    %v630 = vshrl.u32 %v629, 7
    %v631 = vsub.s32 %v628, %v630
    %v632 = vrot.slane %v625, %v631
    %v633 = vcombine.low %v537, %v544
    %v635 = vunpack.c.l.s4 1983009808
    %v636 = vunpack.c.0.s8 %v635
    %v637 = vlaneseq
    %v638 = vshrl.u32 %v637, 7
    %v639 = vsub.s32 %v636, %v638
    %v640 = vrot.slane %v633, %v639
    %v641 = vcombine.low %v547, %v548
    %v643 = vunpack.c.l.s4 1983009808
    %v644 = vunpack.c.0.s8 %v643
    %v645 = vlaneseq
    %v646 = vshrl.u32 %v645, 7
    %v647 = vsub.s32 %v644, %v646
    %v648 = vrot.slane %v641, %v647
    %v649 = vcombine.low %v624, %v632
    %v650 = vcombine.high %v624, %v632
    %v652 = vunpack.c.l.s4 1934713408
    %v653 = vunpack.c.0.s8 %v652
    %v654 = vlaneseq
    %v655 = vshrl.u32 %v654, 7
    %v656 = vsub.s32 %v653, %v655
    %v657 = vrot.slane %v649, %v656
    %v659 = vunpack.c.l.s4 1934713408
    %v660 = vunpack.c.0.s8 %v659
    %v661 = vlaneseq
    %v662 = vshrl.u32 %v661, 7
    %v663 = vsub.s32 %v660, %v662
    %v664 = vrot.slane %v650, %v663
    %v665 = vcombine.low %v640, %v648
    %v666 = vcombine.high %v640, %v648
    %v668 = vunpack.c.l.s4 1934713408
    %v669 = vunpack.c.0.s8 %v668
    %v670 = vlaneseq
    %v671 = vshrl.u32 %v670, 7
    %v672 = vsub.s32 %v669, %v671
    %v673 = vrot.slane %v665, %v672
    %v675 = vunpack.c.l.s4 1934713408
    %v676 = vunpack.c.0.s8 %v675
    %v677 = vlaneseq
    %v678 = vshrl.u32 %v677, 7
    %v679 = vsub.s32 %v676, %v678
    %v680 = vrot.slane %v666, %v679
    %v681 = vcombine.low %v657, %v673
    %v682 = vcombine.high %v657, %v673
    %v683 = vcombine.low %v664, %v680
    %v684 = vcombine.high %v664, %v680
    %v685 = vpack.c.bf16 %v681, %v613
    %v686 = vpack.c.bf16 %v682, %v614
    %v687 = vpack.c.bf16 %v683, %v615
    %v688 = vpack.c.bf16 %v684, %v616
    %689 = vrot.lane.b32.xlu0 %v87, 64
    %v690 = vpop.permute.xlu0 %689
    %691 = vrot.lane.b32.xlu0 %v90, 64
    %v692 = vpop.permute.xlu0 %691
    %693 = vrot.lane.b32.xlu0 %v96, 64
    %v694 = vpop.permute.xlu0 %693
    %695 = vrot.lane.b32.xlu0 %v98, 64
    %v696 = vpop.permute.xlu0 %695
    %697 = vrot.lane.b32.xlu0 %v102, 64
    %v698 = vpop.permute.xlu0 %697
    %699 = vrot.lane.b32.xlu0 %v104, 64
    %v700 = vpop.permute.xlu0 %699
    %701 = vrot.lane.b32.xlu0 %v108, 64
    %v702 = vpop.permute.xlu0 %701
    %703 = vrot.lane.b32.xlu0 %v110, 64
    %v704 = vpop.permute.xlu0 %703
    %v713 = vcombine.low %v690, %v698
    %v714 = vcombine.high %v690, %v698
    %v716 = vunpack.c.l.s4 1983009808
    %v717 = vunpack.c.0.s8 %v716
    %v718 = vlaneseq
    %v719 = vshrl.u32 %v718, 7
    %v720 = vsub.s32 %v717, %v719
    %v721 = vrot.slane %v713, %v720
    %v723 = vunpack.c.l.s4 1983009808
    %v724 = vunpack.c.0.s8 %v723
    %v725 = vlaneseq
    %v726 = vshrl.u32 %v725, 7
    %v727 = vsub.s32 %v724, %v726
    %v728 = vrot.slane %v714, %v727
    %v729 = vcombine.low %v694, %v702
    %v730 = vcombine.high %v694, %v702
    %v732 = vunpack.c.l.s4 1983009808
    %v733 = vunpack.c.0.s8 %v732
    %v734 = vlaneseq
    %v735 = vshrl.u32 %v734, 7
    %v736 = vsub.s32 %v733, %v735
    %v737 = vrot.slane %v729, %v736
    %v739 = vunpack.c.l.s4 1983009808
    %v740 = vunpack.c.0.s8 %v739
    %v741 = vlaneseq
    %v742 = vshrl.u32 %v741, 7
    %v743 = vsub.s32 %v740, %v742
    %v744 = vrot.slane %v730, %v743
    %v745 = vcombine.low %v721, %v737
    %v746 = vcombine.high %v721, %v737
    %v748 = vunpack.c.l.s4 1934713408
    %v749 = vunpack.c.0.s8 %v748
    %v750 = vlaneseq
    %v751 = vshrl.u32 %v750, 7
    %v752 = vsub.s32 %v749, %v751
    %v753 = vrot.slane %v745, %v752
    %v755 = vunpack.c.l.s4 1934713408
    %v756 = vunpack.c.0.s8 %v755
    %v757 = vlaneseq
    %v758 = vshrl.u32 %v757, 7
    %v759 = vsub.s32 %v756, %v758
    %v760 = vrot.slane %v746, %v759
    %v761 = vcombine.low %v728, %v744
    %v762 = vcombine.high %v728, %v744
    %v764 = vunpack.c.l.s4 1934713408
    %v765 = vunpack.c.0.s8 %v764
    %v766 = vlaneseq
    %v767 = vshrl.u32 %v766, 7
    %v768 = vsub.s32 %v765, %v767
    %v769 = vrot.slane %v761, %v768
    %v771 = vunpack.c.l.s4 1934713408
    %v772 = vunpack.c.0.s8 %v771
    %v773 = vlaneseq
    %v774 = vshrl.u32 %v773, 7
    %v775 = vsub.s32 %v772, %v774
    %v776 = vrot.slane %v762, %v775
    %v777 = vcombine.high %v753, 0.0
    %v778 = vcombine.high %v760, 0.0
    %v779 = vcombine.high %v769, 0.0
    %v780 = vcombine.high %v776, 0.0
    %v781 = vcombine.low %v692, %v700
    %v782 = vcombine.high %v692, %v700
    %v784 = vunpack.c.l.s4 1983009808
    %v785 = vunpack.c.0.s8 %v784
    %v786 = vlaneseq
    %v787 = vshrl.u32 %v786, 7
    %v788 = vsub.s32 %v785, %v787
    %v789 = vrot.slane %v781, %v788
    %v791 = vunpack.c.l.s4 1983009808
    %v792 = vunpack.c.0.s8 %v791
    %v793 = vlaneseq
    %v794 = vshrl.u32 %v793, 7
    %v795 = vsub.s32 %v792, %v794
    %v796 = vrot.slane %v782, %v795
    %v797 = vcombine.low %v696, %v704
    %v798 = vcombine.high %v696, %v704
    %v800 = vunpack.c.l.s4 1983009808
    %v801 = vunpack.c.0.s8 %v800
    %v802 = vlaneseq
    %v803 = vshrl.u32 %v802, 7
    %v804 = vsub.s32 %v801, %v803
    %v805 = vrot.slane %v797, %v804
    %v807 = vunpack.c.l.s4 1983009808
    %v808 = vunpack.c.0.s8 %v807
    %v809 = vlaneseq
    %v810 = vshrl.u32 %v809, 7
    %v811 = vsub.s32 %v808, %v810
    %v812 = vrot.slane %v798, %v811
    %v813 = vcombine.low %v789, %v805
    %v814 = vcombine.high %v789, %v805
    %v816 = vunpack.c.l.s4 1934713408
    %v817 = vunpack.c.0.s8 %v816
    %v818 = vlaneseq
    %v819 = vshrl.u32 %v818, 7
    %v820 = vsub.s32 %v817, %v819
    %v821 = vrot.slane %v813, %v820
    %v823 = vunpack.c.l.s4 1934713408
    %v824 = vunpack.c.0.s8 %v823
    %v825 = vlaneseq
    %v826 = vshrl.u32 %v825, 7
    %v827 = vsub.s32 %v824, %v826
    %v828 = vrot.slane %v814, %v827
    %v829 = vcombine.low %v796, %v812
    %v830 = vcombine.high %v796, %v812
    %v832 = vunpack.c.l.s4 1934713408
    %v833 = vunpack.c.0.s8 %v832
    %v834 = vlaneseq
    %v835 = vshrl.u32 %v834, 7
    %v836 = vsub.s32 %v833, %v835
    %v837 = vrot.slane %v829, %v836
    %v839 = vunpack.c.l.s4 1934713408
    %v840 = vunpack.c.0.s8 %v839
    %v841 = vlaneseq
    %v842 = vshrl.u32 %v841, 7
    %v843 = vsub.s32 %v840, %v842
    %v844 = vrot.slane %v830, %v843
    %v845 = vcombine.high %v821, 0.0
    %v846 = vcombine.high %v828, 0.0
    %v847 = vcombine.high %v837, 0.0
    %v848 = vcombine.high %v844, 0.0
    %v849 = vcombine.low %v753, %v760
    %v851 = vunpack.c.l.s4 1983009808
    %v852 = vunpack.c.0.s8 %v851
    %v853 = vlaneseq
    %v854 = vshrl.u32 %v853, 7
    %v855 = vsub.s32 %v852, %v854
    %v856 = vrot.slane %v849, %v855
    %v857 = vcombine.low %v777, %v778
    %v859 = vunpack.c.l.s4 1983009808
    %v860 = vunpack.c.0.s8 %v859
    %v861 = vlaneseq
    %v862 = vshrl.u32 %v861, 7
    %v863 = vsub.s32 %v860, %v862
    %v864 = vrot.slane %v857, %v863
    %v865 = vcombine.low %v769, %v776
    %v867 = vunpack.c.l.s4 1983009808
    %v868 = vunpack.c.0.s8 %v867
    %v869 = vlaneseq
    %v870 = vshrl.u32 %v869, 7
    %v871 = vsub.s32 %v868, %v870
    %v872 = vrot.slane %v865, %v871
    %v873 = vcombine.low %v779, %v780
    %v875 = vunpack.c.l.s4 1983009808
    %v876 = vunpack.c.0.s8 %v875
    %v877 = vlaneseq
    %v878 = vshrl.u32 %v877, 7
    %v879 = vsub.s32 %v876, %v878
    %v880 = vrot.slane %v873, %v879
    %v881 = vcombine.low %v856, %v864
    %v882 = vcombine.high %v856, %v864
    %v884 = vunpack.c.l.s4 1934713408
    %v885 = vunpack.c.0.s8 %v884
    %v886 = vlaneseq
    %v887 = vshrl.u32 %v886, 7
    %v888 = vsub.s32 %v885, %v887
    %v889 = vrot.slane %v881, %v888
    %v891 = vunpack.c.l.s4 1934713408
    %v892 = vunpack.c.0.s8 %v891
    %v893 = vlaneseq
    %v894 = vshrl.u32 %v893, 7
    %v895 = vsub.s32 %v892, %v894
    %v896 = vrot.slane %v882, %v895
    %v897 = vcombine.low %v872, %v880
    %v898 = vcombine.high %v872, %v880
    %v900 = vunpack.c.l.s4 1934713408
    %v901 = vunpack.c.0.s8 %v900
    %v902 = vlaneseq
    %v903 = vshrl.u32 %v902, 7
    %v904 = vsub.s32 %v901, %v903
    %v905 = vrot.slane %v897, %v904
    %v907 = vunpack.c.l.s4 1934713408
    %v908 = vunpack.c.0.s8 %v907
    %v909 = vlaneseq
    %v910 = vshrl.u32 %v909, 7
    %v911 = vsub.s32 %v908, %v910
    %v912 = vrot.slane %v898, %v911
    %v913 = vcombine.low %v889, %v905
    %v914 = vcombine.high %v889, %v905
    %v915 = vcombine.low %v896, %v912
    %v916 = vcombine.high %v896, %v912
    %v917 = vcombine.low %v821, %v828
    %v919 = vunpack.c.l.s4 1983009808
    %v920 = vunpack.c.0.s8 %v919
    %v921 = vlaneseq
    %v922 = vshrl.u32 %v921, 7
    %v923 = vsub.s32 %v920, %v922
    %v924 = vrot.slane %v917, %v923
    %v925 = vcombine.low %v845, %v846
    %v927 = vunpack.c.l.s4 1983009808
    %v928 = vunpack.c.0.s8 %v927
    %v929 = vlaneseq
    %v930 = vshrl.u32 %v929, 7
    %v931 = vsub.s32 %v928, %v930
    %v932 = vrot.slane %v925, %v931
    %v933 = vcombine.low %v837, %v844
    %v935 = vunpack.c.l.s4 1983009808
    %v936 = vunpack.c.0.s8 %v935
    %v937 = vlaneseq
    %v938 = vshrl.u32 %v937, 7
    %v939 = vsub.s32 %v936, %v938
    %v940 = vrot.slane %v933, %v939
    %v941 = vcombine.low %v847, %v848
    %v943 = vunpack.c.l.s4 1983009808
    %v944 = vunpack.c.0.s8 %v943
    %v945 = vlaneseq
    %v946 = vshrl.u32 %v945, 7
    %v947 = vsub.s32 %v944, %v946
    %v948 = vrot.slane %v941, %v947
    %v949 = vcombine.low %v924, %v932
    %v950 = vcombine.high %v924, %v932
    %v952 = vunpack.c.l.s4 1934713408
    %v953 = vunpack.c.0.s8 %v952
    %v954 = vlaneseq
    %v955 = vshrl.u32 %v954, 7
    %v956 = vsub.s32 %v953, %v955
    %v957 = vrot.slane %v949, %v956
    %v959 = vunpack.c.l.s4 1934713408
    %v960 = vunpack.c.0.s8 %v959
    %v961 = vlaneseq
    %v962 = vshrl.u32 %v961, 7
    %v963 = vsub.s32 %v960, %v962
    %v964 = vrot.slane %v950, %v963
    %v965 = vcombine.low %v940, %v948
    %v966 = vcombine.high %v940, %v948
    %v968 = vunpack.c.l.s4 1934713408
    %v969 = vunpack.c.0.s8 %v968
    %v970 = vlaneseq
    %v971 = vshrl.u32 %v970, 7
    %v972 = vsub.s32 %v969, %v971
    %v973 = vrot.slane %v965, %v972
    %v975 = vunpack.c.l.s4 1934713408
    %v976 = vunpack.c.0.s8 %v975
    %v977 = vlaneseq
    %v978 = vshrl.u32 %v977, 7
    %v979 = vsub.s32 %v976, %v978
    %v980 = vrot.slane %v966, %v979
    %v981 = vcombine.low %v957, %v973
    %v982 = vcombine.high %v957, %v973
    %v983 = vcombine.low %v964, %v980
    %v984 = vcombine.high %v964, %v980
    %v985 = vpack.c.bf16 %v981, %v913
    %v986 = vpack.c.bf16 %v982, %v914
    %v987 = vpack.c.bf16 %v983, %v915
    %v988 = vpack.c.bf16 %v984, %v916
    %vm989 = vcmask 64512
    %v991 = vsel %vm989, %v385, 0
    %v994 = vsel %vm989, %v685, 0
    %996 = vmatprep.subr.bf16.mxu0 0
    %997 = vmatpush1.bf16.xpose.msra.mxu0 0
    %998 = vmatprep.subr.bf16.mxu0 0
    %999 = vmatpush1.bf16.xpose.msra.mxu0 0
    %1000 = vmatprep.subr.bf16.mxu0 0
    %1001 = vmatpush1.bf16.xpose.msra.mxu0 0
    %1002 = vmatprep.subr.bf16.mxu0 0
    %1003 = vmatpush1.bf16.xpose.msra.mxu0 0
    %1004 = vmatprep.subr.bf16.mxu0 0
    %1005 = vmatpush1.bf16.xpose.msra.mxu0 0
    %1006 = vmatprep.subr.bf16.mxu0 0
    %1007 = vmatpush1.bf16.xpose.msra.mxu0 0
    %1008 = vmatprep.subr.bf16.mxu0 0
    %1009 = vmatpush1.bf16.xpose.msra.mxu0 0
    %1010 = vmatprep.subr.bf16.mxu0 0
    %1011 = vmatpush1.bf16.xpose.msra.mxu0 %v994
    %1012 = vmatprep.subr.bf16.mxu0 0
    %1013 = vmatpush2.bf16.xpose.msra.mxu0 0
    %1014 = vmatprep.subr.bf16.mxu0 0
    %1015 = vmatpush2.bf16.xpose.msra.mxu0 0
    %1016 = vmatprep.subr.bf16.mxu0 0
    %1017 = vmatpush2.bf16.xpose.msra.mxu0 0
    %1018 = vmatprep.subr.bf16.mxu0 0
    %1019 = vmatpush2.bf16.xpose.msra.mxu0 0
    %1020 = vmatprep.subr.bf16.mxu0 0
    %1021 = vmatpush2.bf16.xpose.msra.mxu0 0
    %1022 = vmatprep.subr.bf16.mxu0 0
    %1023 = vmatpush2.bf16.xpose.msra.mxu0 0
    %1024 = vmatprep.subr.bf16.mxu0 0
    %1025 = vmatpush2.bf16.xpose.msra.mxu0 0
    %1026 = vmatprep.subr.bf16.mxu0 0
    %1027 = vmatpush2.bf16.xpose.msra.mxu0 0
    %1028 = vmatprep.mubr.bf16.mxu0 0
    %1029 = vmatmul.mubr.bf16.gmra.mxu0 %v991
    %v1030 = vpop.f32.mrf.mxu0
    %v1031 = vadd.f32 0.0, %v1030
    %v1032 = vpop.f32.mrf.mxu0
    %v1033 = vpop.f32.mrf.mxu0
    %v1034 = vadd.f32 0.0, %v1033
    %v1035 = vpop.f32.mrf.mxu0
    %1036 = vdwg.mxu0
    %v1038 = vsel %vm989, %v386, 0
    %v1041 = vsel %vm989, %v686, 0
    %1043 = vmatprep.subr.bf16.mxu0 0
    %1044 = vmatpush1.bf16.xpose.msra.mxu0 0
    %1045 = vmatprep.subr.bf16.mxu0 0
    %1046 = vmatpush1.bf16.xpose.msra.mxu0 0
    %1047 = vmatprep.subr.bf16.mxu0 0
    %1048 = vmatpush1.bf16.xpose.msra.mxu0 0
    %1049 = vmatprep.subr.bf16.mxu0 0
    %1050 = vmatpush1.bf16.xpose.msra.mxu0 0
    %1051 = vmatprep.subr.bf16.mxu0 0
    %1052 = vmatpush1.bf16.xpose.msra.mxu0 0
    %1053 = vmatprep.subr.bf16.mxu0 0
    %1054 = vmatpush1.bf16.xpose.msra.mxu0 0
    %1055 = vmatprep.subr.bf16.mxu0 0
    %1056 = vmatpush1.bf16.xpose.msra.mxu0 0
    %1057 = vmatprep.subr.bf16.mxu0 0
    %1058 = vmatpush1.bf16.xpose.msra.mxu0 %v1041
    %1059 = vmatprep.subr.bf16.mxu0 0
    %1060 = vmatpush2.bf16.xpose.msra.mxu0 0
    %1061 = vmatprep.subr.bf16.mxu0 0
    %1062 = vmatpush2.bf16.xpose.msra.mxu0 0
    %1063 = vmatprep.subr.bf16.mxu0 0
    %1064 = vmatpush2.bf16.xpose.msra.mxu0 0
    %1065 = vmatprep.subr.bf16.mxu0 0
    %1066 = vmatpush2.bf16.xpose.msra.mxu0 0
    %1067 = vmatprep.subr.bf16.mxu0 0
    %1068 = vmatpush2.bf16.xpose.msra.mxu0 0
    %1069 = vmatprep.subr.bf16.mxu0 0
    %1070 = vmatpush2.bf16.xpose.msra.mxu0 0
    %1071 = vmatprep.subr.bf16.mxu0 0
    %1072 = vmatpush2.bf16.xpose.msra.mxu0 0
    %1073 = vmatprep.subr.bf16.mxu0 0
    %1074 = vmatpush2.bf16.xpose.msra.mxu0 0
    %1075 = vmatprep.mubr.bf16.mxu0 0
    %1076 = vmatmul.mubr.bf16.gmra.mxu0 %v1038
    %v1077 = vpop.f32.mrf.mxu0
    %v1078 = vadd.f32 0.0, %v1077
    %v1079 = vpop.f32.mrf.mxu0
    %v1080 = vpop.f32.mrf.mxu0
    %v1081 = vadd.f32 0.0, %v1080
    %v1082 = vpop.f32.mrf.mxu0
    %1083 = vdwg.mxu0
    %v1085 = vsel %vm989, %v387, 0
    %v1088 = vsel %vm989, %v687, 0
    %1090 = vmatprep.subr.bf16.mxu0 0
    %1091 = vmatpush1.bf16.xpose.msra.mxu0 0
    %1092 = vmatprep.subr.bf16.mxu0 0
    %1093 = vmatpush1.bf16.xpose.msra.mxu0 0
    %1094 = vmatprep.subr.bf16.mxu0 0
    %1095 = vmatpush1.bf16.xpose.msra.mxu0 0
    %1096 = vmatprep.subr.bf16.mxu0 0
    %1097 = vmatpush1.bf16.xpose.msra.mxu0 0
    %1098 = vmatprep.subr.bf16.mxu0 0
    %1099 = vmatpush1.bf16.xpose.msra.mxu0 0
    %1100 = vmatprep.subr.bf16.mxu0 0
    %1101 = vmatpush1.bf16.xpose.msra.mxu0 0
    %1102 = vmatprep.subr.bf16.mxu0 0
    %1103 = vmatpush1.bf16.xpose.msra.mxu0 0
    %1104 = vmatprep.subr.bf16.mxu0 0
    %1105 = vmatpush1.bf16.xpose.msra.mxu0 %v1088
    %1106 = vmatprep.subr.bf16.mxu0 0
    %1107 = vmatpush2.bf16.xpose.msra.mxu0 0
    %1108 = vmatprep.subr.bf16.mxu0 0
    %1109 = vmatpush2.bf16.xpose.msra.mxu0 0
    %1110 = vmatprep.subr.bf16.mxu0 0
    %1111 = vmatpush2.bf16.xpose.msra.mxu0 0
    %1112 = vmatprep.subr.bf16.mxu0 0
    %1113 = vmatpush2.bf16.xpose.msra.mxu0 0
    %1114 = vmatprep.subr.bf16.mxu0 0
    %1115 = vmatpush2.bf16.xpose.msra.mxu0 0
    %1116 = vmatprep.subr.bf16.mxu0 0
    %1117 = vmatpush2.bf16.xpose.msra.mxu0 0
    %1118 = vmatprep.subr.bf16.mxu0 0
    %1119 = vmatpush2.bf16.xpose.msra.mxu0 0
    %1120 = vmatprep.subr.bf16.mxu0 0
    %1121 = vmatpush2.bf16.xpose.msra.mxu0 0
    %1122 = vmatprep.mubr.bf16.mxu0 0
    %1123 = vmatmul.mubr.bf16.gmra.mxu0 %v1085
    %v1124 = vpop.f32.mrf.mxu0
    %v1125 = vadd.f32 0.0, %v1124
    %v1126 = vpop.f32.mrf.mxu0
    %v1127 = vpop.f32.mrf.mxu0
    %v1128 = vadd.f32 0.0, %v1127
    %v1129 = vpop.f32.mrf.mxu0
    %1130 = vdwg.mxu0
    %v1132 = vsel %vm989, %v388, 0
    %v1135 = vsel %vm989, %v688, 0
    %1137 = vmatprep.subr.bf16.mxu0 0
    %1138 = vmatpush1.bf16.xpose.msra.mxu0 0
    %1139 = vmatprep.subr.bf16.mxu0 0
    %1140 = vmatpush1.bf16.xpose.msra.mxu0 0
    %1141 = vmatprep.subr.bf16.mxu0 0
    %1142 = vmatpush1.bf16.xpose.msra.mxu0 0
    %1143 = vmatprep.subr.bf16.mxu0 0
    %1144 = vmatpush1.bf16.xpose.msra.mxu0 0
    %1145 = vmatprep.subr.bf16.mxu0 0
    %1146 = vmatpush1.bf16.xpose.msra.mxu0 0
    %1147 = vmatprep.subr.bf16.mxu0 0
    %1148 = vmatpush1.bf16.xpose.msra.mxu0 0
    %1149 = vmatprep.subr.bf16.mxu0 0
    %1150 = vmatpush1.bf16.xpose.msra.mxu0 0
    %1151 = vmatprep.subr.bf16.mxu0 0
    %1152 = vmatpush1.bf16.xpose.msra.mxu0 %v1135
    %1153 = vmatprep.subr.bf16.mxu0 0
    %1154 = vmatpush2.bf16.xpose.msra.mxu0 0
    %1155 = vmatprep.subr.bf16.mxu0 0
    %1156 = vmatpush2.bf16.xpose.msra.mxu0 0
    %1157 = vmatprep.subr.bf16.mxu0 0
    %1158 = vmatpush2.bf16.xpose.msra.mxu0 0
    %1159 = vmatprep.subr.bf16.mxu0 0
    %1160 = vmatpush2.bf16.xpose.msra.mxu0 0
    %1161 = vmatprep.subr.bf16.mxu0 0
    %1162 = vmatpush2.bf16.xpose.msra.mxu0 0
    %1163 = vmatprep.subr.bf16.mxu0 0
    %1164 = vmatpush2.bf16.xpose.msra.mxu0 0
    %1165 = vmatprep.subr.bf16.mxu0 0
    %1166 = vmatpush2.bf16.xpose.msra.mxu0 0
    %1167 = vmatprep.subr.bf16.mxu0 0
    %1168 = vmatpush2.bf16.xpose.msra.mxu0 0
    %1169 = vmatprep.mubr.bf16.mxu0 0
    %1170 = vmatmul.mubr.bf16.gmra.mxu0 %v1132
    %v1171 = vpop.f32.mrf.mxu0
    %v1172 = vadd.f32 0.0, %v1171
    %v1173 = vpop.f32.mrf.mxu0
    %v1174 = vpop.f32.mrf.mxu0
    %v1175 = vadd.f32 0.0, %v1174
    %v1176 = vpop.f32.mrf.mxu0
    %1177 = vdwg.mxu0
    %v1178 = vmul.f32 %v1031, 0.35355338
    %v1179 = vmul.f32 %v1034, 0.35355338
    %v1180 = vmul.f32 %v1078, 0.35355338
    %v1181 = vmul.f32 %v1081, 0.35355338
    %v1182 = vmul.f32 %v1125, 0.35355338
    %v1183 = vmul.f32 %v1128, 0.35355338
    %v1184 = vmul.f32 %v1172, 0.35355338
    %v1185 = vmul.f32 %v1175, 0.35355338
    %v1186 = vlaneseq
    %v1187 = vshrl.u32 %v1186, 7
    %v1188 = vadd.s32 %v1187, 8
    %v1189 = vlaneseq
    %v1190 = vand.u32 %v1189, 127
    %vm1191 = vcmp.lt.s32.totalorder %v1187, 0
    %v1192 = vsub.s32 0, %v1187
    %v1193 = vsel %vm1191, %v1192, %v1187
    %v1194 = vshrl.u32 %v1193, 1
    %v1195 = vand.u32 %v1193, 1
    %v1196 = vsub.s32 0, %v1195
    %v1197 = vsel %vm1191, %v1196, %v1195
    %vm1198 = vcmp.lt.s32.totalorder %v1188, 0
    %v1199 = vsub.s32 0, %v1188
    %v1200 = vsel %vm1198, %v1199, %v1188
    %v1201 = vshrl.u32 %v1200, 1
    %v1202 = vand.u32 %v1200, 1
    %v1203 = vsub.s32 0, %v1202
    %v1204 = vsel %vm1198, %v1203, %v1202
    %vm1205 = vcmp.ne.s32.totalorder %v1197, 0
    %vm1206 = vcmp.ne.s32.totalorder %v1204, 0
    %vm1207 = vcmp.lt.s32.totalorder %v1197, 0
    %vm1208 = vcmp.lt.s32.totalorder %v1204, 0
    %vm1209 = vmand %vm1207, %vm1205
    %vm1210 = vmand %vm1208, %vm1206
    %v1211 = vadd.s32 %v1197, 2
    %v1212 = vadd.s32 %v1204, 2
    %v1213 = vsel %vm1209, %v1211, %v1197
    %v1214 = vsel %vm1210, %v1212, %v1204
    %vm1215 = vcmp.lt.s32.totalorder %v1190, 0
    %v1216 = vsub.s32 0, %v1190
    %v1217 = vsel %vm1215, %v1216, %v1190
    %v1218 = vshrl.u32 %v1217, 1
    %v1219 = vand.u32 %v1217, 1
    %v1220 = vsub.s32 0, %v1219
    %v1221 = vsel %vm1215, %v1220, %v1219
    %vm1222 = vcmp.ne.s32.totalorder %v1221, 0
    %vm1223 = vcmp.lt.s32.totalorder %v1221, 0
    %vm1224 = vmand %vm1223, %vm1222
    %v1225 = vadd.s32 %v1221, 2
    %v1226 = vsel %vm1224, %v1225, %v1221
    %vm1227 = vcmp.eq.s32.totalorder %v1213, %v1226
    %vm1228 = vcmp.eq.s32.totalorder %v1214, %v1226
    %v1229 = vsel %vm1227, 0.0, -1e+30
    %v1230 = vsel %vm1228, 0.0, -1e+30
    %v1231 = vadd.f32 %v1178, %v1229
    %v1232 = vadd.f32 %v1179, %v1230
    %v1233 = vadd.f32 %v1180, %v1229
    %v1234 = vadd.f32 %v1181, %v1230
    %v1235 = vadd.f32 %v1182, %v1229
    %v1236 = vadd.f32 %v1183, %v1230
    %v1237 = vadd.f32 %v1184, %v1229
    %v1238 = vadd.f32 %v1185, %v1230
    %vm1239 = vcmask 130048
    %v1240 = vsel %vm1239, %v1231, -inf
    %1241 = vmax.xlane.f32.xlu0 %v1240
    %v1242 = vpop.xlane.xlu0 %1241
    %v1243 = vsel %vm1239, %v1232, -inf
    %1244 = vmax.xlane.f32.xlu0 %v1243
    %v1245 = vpop.xlane.xlu0 %1244
    %v1246 = vsel %vm1239, %v1233, -inf
    %1247 = vmax.xlane.f32.xlu0 %v1246
    %v1248 = vpop.xlane.xlu0 %1247
    %v1249 = vsel %vm1239, %v1234, -inf
    %1250 = vmax.xlane.f32.xlu0 %v1249
    %v1251 = vpop.xlane.xlu0 %1250
    %v1252 = vsel %vm1239, %v1235, -inf
    %1253 = vmax.xlane.f32.xlu0 %v1252
    %v1254 = vpop.xlane.xlu0 %1253
    %v1255 = vsel %vm1239, %v1236, -inf
    %1256 = vmax.xlane.f32.xlu0 %v1255
    %v1257 = vpop.xlane.xlu0 %1256
    %v1258 = vsel %vm1239, %v1237, -inf
    %1259 = vmax.xlane.f32.xlu0 %v1258
    %v1260 = vpop.xlane.xlu0 %1259
    %v1261 = vsel %vm1239, %v1238, -inf
    %1262 = vmax.xlane.f32.xlu0 %v1261
    %v1263 = vpop.xlane.xlu0 %1262
    %v1264 = vsub.f32 %v1231, %v1242
    %v1265 = vsub.f32 %v1232, %v1245
    %v1266 = vsub.f32 %v1233, %v1248
    %v1267 = vsub.f32 %v1234, %v1251
    %v1268 = vsub.f32 %v1235, %v1254
    %v1269 = vsub.f32 %v1236, %v1257
    %v1270 = vsub.f32 %v1237, %v1260
    %v1271 = vsub.f32 %v1238, %v1263
    %v1272 = vmul.f32 %v1264, 1.442695
    %v1273 = vpow.pop %v1272
    %v1274 = vmul.f32 %v1265, 1.442695
    %v1275 = vpow.pop %v1274
    %v1276 = vmul.f32 %v1266, 1.442695
    %v1277 = vpow.pop %v1276
    %v1278 = vmul.f32 %v1267, 1.442695
    %v1279 = vpow.pop %v1278
    %v1280 = vmul.f32 %v1268, 1.442695
    %v1281 = vpow.pop %v1280
    %v1282 = vmul.f32 %v1269, 1.442695
    %v1283 = vpow.pop %v1282
    %v1284 = vmul.f32 %v1270, 1.442695
    %v1285 = vpow.pop %v1284
    %v1286 = vmul.f32 %v1271, 1.442695
    %v1287 = vpow.pop %v1286
    %v1288 = vsel %vm1239, %v1273, 0.0
    %1289 = vadd.xlane.f32.xlu0 %v1288
    %v1290 = vpop.xlane.xlu0 %1289
    %v1291 = vsel %vm1239, %v1275, 0.0
    %1292 = vadd.xlane.f32.xlu0 %v1291
    %v1293 = vpop.xlane.xlu0 %1292
    %v1294 = vsel %vm1239, %v1277, 0.0
    %1295 = vadd.xlane.f32.xlu0 %v1294
    %v1296 = vpop.xlane.xlu0 %1295
    %v1297 = vsel %vm1239, %v1279, 0.0
    %1298 = vadd.xlane.f32.xlu0 %v1297
    %v1299 = vpop.xlane.xlu0 %1298
    %v1300 = vsel %vm1239, %v1281, 0.0
    %1301 = vadd.xlane.f32.xlu0 %v1300
    %v1302 = vpop.xlane.xlu0 %1301
    %v1303 = vsel %vm1239, %v1283, 0.0
    %1304 = vadd.xlane.f32.xlu0 %v1303
    %v1305 = vpop.xlane.xlu0 %1304
    %v1306 = vsel %vm1239, %v1285, 0.0
    %1307 = vadd.xlane.f32.xlu0 %v1306
    %v1308 = vpop.xlane.xlu0 %1307
    %v1309 = vsel %vm1239, %v1287, 0.0
    %1310 = vadd.xlane.f32.xlu0 %v1309
    %v1311 = vpop.xlane.xlu0 %1310
    %v1312 = vrcp.pop %v1290
    %v1313 = vrcp.pop %v1293
    %v1314 = vrcp.pop %v1296
    %v1315 = vrcp.pop %v1299
    %v1316 = vrcp.pop %v1302
    %v1317 = vrcp.pop %v1305
    %v1318 = vrcp.pop %v1308
    %v1319 = vrcp.pop %v1311
    %v1320 = vmul.f32 %v1273, %v1312
    %v1321 = vmul.f32 %v1275, %v1313
    %v1322 = vmul.f32 %v1277, %v1314
    %v1323 = vmul.f32 %v1279, %v1315
    %v1324 = vmul.f32 %v1281, %v1316
    %v1325 = vmul.f32 %v1283, %v1317
    %v1326 = vmul.f32 %v1285, %v1318
    %v1327 = vmul.f32 %v1287, %v1319
    %v1328 = vpack.c.bf16 %v1321, %v1320
    %v1329 = vpack.c.bf16 %v1323, %v1322
    %v1330 = vpack.c.bf16 %v1325, %v1324
    %v1331 = vpack.c.bf16 %v1327, %v1326
    %v1333 = vsel %vm1239, %v1328, 0
    %1335 = vmatprep.subr.bf16.mxu0 0
    %1336 = vmatpush1.bf16.msra.mxu0 0
    %1337 = vmatprep.subr.bf16.mxu0 0
    %1338 = vmatpush1.bf16.msra.mxu0 0
    %1339 = vmatprep.subr.bf16.mxu0 0
    %1340 = vmatpush1.bf16.msra.mxu0 0
    %1341 = vmatprep.subr.bf16.mxu0 0
    %1342 = vmatpush1.bf16.msra.mxu0 0
    %1343 = vmatprep.subr.bf16.mxu0 0
    %1344 = vmatpush1.bf16.msra.mxu0 0
    %1345 = vmatprep.subr.bf16.mxu0 0
    %1346 = vmatpush1.bf16.msra.mxu0 0
    %1347 = vmatprep.subr.bf16.mxu0 0
    %1348 = vmatpush1.bf16.msra.mxu0 0
    %1349 = vmatprep.subr.bf16.mxu0 0
    %1350 = vmatpush1.bf16.msra.mxu0 %v985
    %1351 = vmatprep.subr.bf16.mxu0 0
    %1352 = vmatpush2.bf16.msra.mxu0 0
    %1353 = vmatprep.subr.bf16.mxu0 0
    %1354 = vmatpush2.bf16.msra.mxu0 0
    %1355 = vmatprep.subr.bf16.mxu0 0
    %1356 = vmatpush2.bf16.msra.mxu0 0
    %1357 = vmatprep.subr.bf16.mxu0 0
    %1358 = vmatpush2.bf16.msra.mxu0 0
    %1359 = vmatprep.subr.bf16.mxu0 0
    %1360 = vmatpush2.bf16.msra.mxu0 0
    %1361 = vmatprep.subr.bf16.mxu0 0
    %1362 = vmatpush2.bf16.msra.mxu0 0
    %1363 = vmatprep.subr.bf16.mxu0 0
    %1364 = vmatpush2.bf16.msra.mxu0 0
    %1365 = vmatprep.subr.bf16.mxu0 0
    %1366 = vmatpush2.bf16.msra.mxu0 0
    %1367 = vmatprep.mubr.bf16.mxu0 0
    %1368 = vmatmul.mubr.bf16.gmra.mxu0 %v1333
    %v1369 = vpop.f32.mrf.mxu0
    %v1370 = vadd.f32 0.0, %v1369
    %v1371 = vpop.f32.mrf.mxu0
    %v1372 = vpop.f32.mrf.mxu0
    %v1373 = vadd.f32 0.0, %v1372
    %v1374 = vpop.f32.mrf.mxu0
    %1375 = vdwg.mxu0
    %v1377 = vsel %vm1239, %v1329, 0
    %1379 = vmatprep.subr.bf16.mxu0 0
    %1380 = vmatpush1.bf16.msra.mxu0 0
    %1381 = vmatprep.subr.bf16.mxu0 0
    %1382 = vmatpush1.bf16.msra.mxu0 0
    %1383 = vmatprep.subr.bf16.mxu0 0
    %1384 = vmatpush1.bf16.msra.mxu0 0
    %1385 = vmatprep.subr.bf16.mxu0 0
    %1386 = vmatpush1.bf16.msra.mxu0 0
    %1387 = vmatprep.subr.bf16.mxu0 0
    %1388 = vmatpush1.bf16.msra.mxu0 0
    %1389 = vmatprep.subr.bf16.mxu0 0
    %1390 = vmatpush1.bf16.msra.mxu0 0
    %1391 = vmatprep.subr.bf16.mxu0 0
    %1392 = vmatpush1.bf16.msra.mxu0 0
    %1393 = vmatprep.subr.bf16.mxu0 0
    %1394 = vmatpush1.bf16.msra.mxu0 %v986
    %1395 = vmatprep.subr.bf16.mxu0 0
    %1396 = vmatpush2.bf16.msra.mxu0 0
    %1397 = vmatprep.subr.bf16.mxu0 0
    %1398 = vmatpush2.bf16.msra.mxu0 0
    %1399 = vmatprep.subr.bf16.mxu0 0
    %1400 = vmatpush2.bf16.msra.mxu0 0
    %1401 = vmatprep.subr.bf16.mxu0 0
    %1402 = vmatpush2.bf16.msra.mxu0 0
    %1403 = vmatprep.subr.bf16.mxu0 0
    %1404 = vmatpush2.bf16.msra.mxu0 0
    %1405 = vmatprep.subr.bf16.mxu0 0
    %1406 = vmatpush2.bf16.msra.mxu0 0
    %1407 = vmatprep.subr.bf16.mxu0 0
    %1408 = vmatpush2.bf16.msra.mxu0 0
    %1409 = vmatprep.subr.bf16.mxu0 0
    %1410 = vmatpush2.bf16.msra.mxu0 0
    %1411 = vmatprep.mubr.bf16.mxu0 0
    %1412 = vmatmul.mubr.bf16.gmra.mxu0 %v1377
    %v1413 = vpop.f32.mrf.mxu0
    %v1414 = vadd.f32 0.0, %v1413
    %v1415 = vpop.f32.mrf.mxu0
    %v1416 = vpop.f32.mrf.mxu0
    %v1417 = vadd.f32 0.0, %v1416
    %v1418 = vpop.f32.mrf.mxu0
    %1419 = vdwg.mxu0
    %v1421 = vsel %vm1239, %v1330, 0
    %1423 = vmatprep.subr.bf16.mxu0 0
    %1424 = vmatpush1.bf16.msra.mxu0 0
    %1425 = vmatprep.subr.bf16.mxu0 0
    %1426 = vmatpush1.bf16.msra.mxu0 0
    %1427 = vmatprep.subr.bf16.mxu0 0
    %1428 = vmatpush1.bf16.msra.mxu0 0
    %1429 = vmatprep.subr.bf16.mxu0 0
    %1430 = vmatpush1.bf16.msra.mxu0 0
    %1431 = vmatprep.subr.bf16.mxu0 0
    %1432 = vmatpush1.bf16.msra.mxu0 0
    %1433 = vmatprep.subr.bf16.mxu0 0
    %1434 = vmatpush1.bf16.msra.mxu0 0
    %1435 = vmatprep.subr.bf16.mxu0 0
    %1436 = vmatpush1.bf16.msra.mxu0 0
    %1437 = vmatprep.subr.bf16.mxu0 0
    %1438 = vmatpush1.bf16.msra.mxu0 %v987
    %1439 = vmatprep.subr.bf16.mxu0 0
    %1440 = vmatpush2.bf16.msra.mxu0 0
    %1441 = vmatprep.subr.bf16.mxu0 0
    %1442 = vmatpush2.bf16.msra.mxu0 0
    %1443 = vmatprep.subr.bf16.mxu0 0
    %1444 = vmatpush2.bf16.msra.mxu0 0
    %1445 = vmatprep.subr.bf16.mxu0 0
    %1446 = vmatpush2.bf16.msra.mxu0 0
    %1447 = vmatprep.subr.bf16.mxu0 0
    %1448 = vmatpush2.bf16.msra.mxu0 0
    %1449 = vmatprep.subr.bf16.mxu0 0
    %1450 = vmatpush2.bf16.msra.mxu0 0
    %1451 = vmatprep.subr.bf16.mxu0 0
    %1452 = vmatpush2.bf16.msra.mxu0 0
    %1453 = vmatprep.subr.bf16.mxu0 0
    %1454 = vmatpush2.bf16.msra.mxu0 0
    %1455 = vmatprep.mubr.bf16.mxu0 0
    %1456 = vmatmul.mubr.bf16.gmra.mxu0 %v1421
    %v1457 = vpop.f32.mrf.mxu0
    %v1458 = vadd.f32 0.0, %v1457
    %v1459 = vpop.f32.mrf.mxu0
    %v1460 = vpop.f32.mrf.mxu0
    %v1461 = vadd.f32 0.0, %v1460
    %v1462 = vpop.f32.mrf.mxu0
    %1463 = vdwg.mxu0
    %v1465 = vsel %vm1239, %v1331, 0
    %1467 = vmatprep.subr.bf16.mxu0 0
    %1468 = vmatpush1.bf16.msra.mxu0 0
    %1469 = vmatprep.subr.bf16.mxu0 0
    %1470 = vmatpush1.bf16.msra.mxu0 0
    %1471 = vmatprep.subr.bf16.mxu0 0
    %1472 = vmatpush1.bf16.msra.mxu0 0
    %1473 = vmatprep.subr.bf16.mxu0 0
    %1474 = vmatpush1.bf16.msra.mxu0 0
    %1475 = vmatprep.subr.bf16.mxu0 0
    %1476 = vmatpush1.bf16.msra.mxu0 0
    %1477 = vmatprep.subr.bf16.mxu0 0
    %1478 = vmatpush1.bf16.msra.mxu0 0
    %1479 = vmatprep.subr.bf16.mxu0 0
    %1480 = vmatpush1.bf16.msra.mxu0 0
    %1481 = vmatprep.subr.bf16.mxu0 0
    %1482 = vmatpush1.bf16.msra.mxu0 %v988
    %1483 = vmatprep.subr.bf16.mxu0 0
    %1484 = vmatpush2.bf16.msra.mxu0 0
    %1485 = vmatprep.subr.bf16.mxu0 0
    %1486 = vmatpush2.bf16.msra.mxu0 0
    %1487 = vmatprep.subr.bf16.mxu0 0
    %1488 = vmatpush2.bf16.msra.mxu0 0
    %1489 = vmatprep.subr.bf16.mxu0 0
    %1490 = vmatpush2.bf16.msra.mxu0 0
    %1491 = vmatprep.subr.bf16.mxu0 0
    %1492 = vmatpush2.bf16.msra.mxu0 0
    %1493 = vmatprep.subr.bf16.mxu0 0
    %1494 = vmatpush2.bf16.msra.mxu0 0
    %1495 = vmatprep.subr.bf16.mxu0 0
    %1496 = vmatpush2.bf16.msra.mxu0 0
    %1497 = vmatprep.subr.bf16.mxu0 0
    %1498 = vmatpush2.bf16.msra.mxu0 0
    %1499 = vmatprep.mubr.bf16.mxu0 0
    %1500 = vmatmul.mubr.bf16.gmra.mxu0 %v1465
    %v1501 = vpop.f32.mrf.mxu0
    %v1502 = vadd.f32 0.0, %v1501
    %v1503 = vpop.f32.mrf.mxu0
    %v1504 = vpop.f32.mrf.mxu0
    %v1505 = vadd.f32 0.0, %v1504
    %v1506 = vpop.f32.mrf.mxu0
    %1507 = vdwg.mxu0
    %v1508 = vcombine.low %v1370, %v1458
    %v1509 = vcombine.high %v1370, %v1458
    %v1511 = vunpack.c.l.s4 1983009808
    %v1512 = vunpack.c.0.s8 %v1511
    %v1513 = vlaneseq
    %v1514 = vshrl.u32 %v1513, 7
    %v1515 = vsub.s32 %v1512, %v1514
    %v1516 = vrot.slane %v1508, %v1515
    %v1518 = vunpack.c.l.s4 1983009808
    %v1519 = vunpack.c.0.s8 %v1518
    %v1520 = vlaneseq
    %v1521 = vshrl.u32 %v1520, 7
    %v1522 = vsub.s32 %v1519, %v1521
    %v1523 = vrot.slane %v1509, %v1522
    %v1524 = vcombine.low %v1414, %v1502
    %v1525 = vcombine.high %v1414, %v1502
    %v1527 = vunpack.c.l.s4 1983009808
    %v1528 = vunpack.c.0.s8 %v1527
    %v1529 = vlaneseq
    %v1530 = vshrl.u32 %v1529, 7
    %v1531 = vsub.s32 %v1528, %v1530
    %v1532 = vrot.slane %v1524, %v1531
    %v1534 = vunpack.c.l.s4 1983009808
    %v1535 = vunpack.c.0.s8 %v1534
    %v1536 = vlaneseq
    %v1537 = vshrl.u32 %v1536, 7
    %v1538 = vsub.s32 %v1535, %v1537
    %v1539 = vrot.slane %v1525, %v1538
    %v1540 = vcombine.low %v1516, %v1532
    %v1541 = vcombine.high %v1516, %v1532
    %v1543 = vunpack.c.l.s4 1934713408
    %v1544 = vunpack.c.0.s8 %v1543
    %v1545 = vlaneseq
    %v1546 = vshrl.u32 %v1545, 7
    %v1547 = vsub.s32 %v1544, %v1546
    %v1548 = vrot.slane %v1540, %v1547
    %v1550 = vunpack.c.l.s4 1934713408
    %v1551 = vunpack.c.0.s8 %v1550
    %v1552 = vlaneseq
    %v1553 = vshrl.u32 %v1552, 7
    %v1554 = vsub.s32 %v1551, %v1553
    %v1555 = vrot.slane %v1541, %v1554
    %v1556 = vcombine.low %v1523, %v1539
    %v1557 = vcombine.high %v1523, %v1539
    %v1559 = vunpack.c.l.s4 1934713408
    %v1560 = vunpack.c.0.s8 %v1559
    %v1561 = vlaneseq
    %v1562 = vshrl.u32 %v1561, 7
    %v1563 = vsub.s32 %v1560, %v1562
    %v1564 = vrot.slane %v1556, %v1563
    %v1566 = vunpack.c.l.s4 1934713408
    %v1567 = vunpack.c.0.s8 %v1566
    %v1568 = vlaneseq
    %v1569 = vshrl.u32 %v1568, 7
    %v1570 = vsub.s32 %v1567, %v1569
    %v1571 = vrot.slane %v1557, %v1570
    %v1572 = vcombine.high %v1548, 0.0
    %v1573 = vcombine.high %v1555, 0.0
    %v1574 = vcombine.high %v1564, 0.0
    %v1575 = vcombine.high %v1571, 0.0
    %v1576 = vcombine.low %v1373, %v1461
    %v1577 = vcombine.high %v1373, %v1461
    %v1579 = vunpack.c.l.s4 1983009808
    %v1580 = vunpack.c.0.s8 %v1579
    %v1581 = vlaneseq
    %v1582 = vshrl.u32 %v1581, 7
    %v1583 = vsub.s32 %v1580, %v1582
    %v1584 = vrot.slane %v1576, %v1583
    %v1586 = vunpack.c.l.s4 1983009808
    %v1587 = vunpack.c.0.s8 %v1586
    %v1588 = vlaneseq
    %v1589 = vshrl.u32 %v1588, 7
    %v1590 = vsub.s32 %v1587, %v1589
    %v1591 = vrot.slane %v1577, %v1590
    %v1592 = vcombine.low %v1417, %v1505
    %v1593 = vcombine.high %v1417, %v1505
    %v1595 = vunpack.c.l.s4 1983009808
    %v1596 = vunpack.c.0.s8 %v1595
    %v1597 = vlaneseq
    %v1598 = vshrl.u32 %v1597, 7
    %v1599 = vsub.s32 %v1596, %v1598
    %v1600 = vrot.slane %v1592, %v1599
    %v1602 = vunpack.c.l.s4 1983009808
    %v1603 = vunpack.c.0.s8 %v1602
    %v1604 = vlaneseq
    %v1605 = vshrl.u32 %v1604, 7
    %v1606 = vsub.s32 %v1603, %v1605
    %v1607 = vrot.slane %v1593, %v1606
    %v1608 = vcombine.low %v1584, %v1600
    %v1609 = vcombine.high %v1584, %v1600
    %v1611 = vunpack.c.l.s4 1934713408
    %v1612 = vunpack.c.0.s8 %v1611
    %v1613 = vlaneseq
    %v1614 = vshrl.u32 %v1613, 7
    %v1615 = vsub.s32 %v1612, %v1614
    %v1616 = vrot.slane %v1608, %v1615
    %v1618 = vunpack.c.l.s4 1934713408
    %v1619 = vunpack.c.0.s8 %v1618
    %v1620 = vlaneseq
    %v1621 = vshrl.u32 %v1620, 7
    %v1622 = vsub.s32 %v1619, %v1621
    %v1623 = vrot.slane %v1609, %v1622
    %v1624 = vcombine.low %v1591, %v1607
    %v1625 = vcombine.high %v1591, %v1607
    %v1627 = vunpack.c.l.s4 1934713408
    %v1628 = vunpack.c.0.s8 %v1627
    %v1629 = vlaneseq
    %v1630 = vshrl.u32 %v1629, 7
    %v1631 = vsub.s32 %v1628, %v1630
    %v1632 = vrot.slane %v1624, %v1631
    %v1634 = vunpack.c.l.s4 1934713408
    %v1635 = vunpack.c.0.s8 %v1634
    %v1636 = vlaneseq
    %v1637 = vshrl.u32 %v1636, 7
    %v1638 = vsub.s32 %v1635, %v1637
    %v1639 = vrot.slane %v1625, %v1638
    %v1640 = vcombine.high %v1616, 0.0
    %v1641 = vcombine.high %v1623, 0.0
    %v1642 = vcombine.high %v1632, 0.0
    %v1643 = vcombine.high %v1639, 0.0
    %v1644 = vcombine.low %v1548, %v1555
    %v1646 = vunpack.c.l.s4 1983009808
    %v1647 = vunpack.c.0.s8 %v1646
    %v1648 = vlaneseq
    %v1649 = vshrl.u32 %v1648, 7
    %v1650 = vsub.s32 %v1647, %v1649
    %v1651 = vrot.slane %v1644, %v1650
    %v1652 = vcombine.low %v1572, %v1573
    %v1654 = vunpack.c.l.s4 1983009808
    %v1655 = vunpack.c.0.s8 %v1654
    %v1656 = vlaneseq
    %v1657 = vshrl.u32 %v1656, 7
    %v1658 = vsub.s32 %v1655, %v1657
    %v1659 = vrot.slane %v1652, %v1658
    %v1660 = vcombine.low %v1564, %v1571
    %v1662 = vunpack.c.l.s4 1983009808
    %v1663 = vunpack.c.0.s8 %v1662
    %v1664 = vlaneseq
    %v1665 = vshrl.u32 %v1664, 7
    %v1666 = vsub.s32 %v1663, %v1665
    %v1667 = vrot.slane %v1660, %v1666
    %v1668 = vcombine.low %v1574, %v1575
    %v1670 = vunpack.c.l.s4 1983009808
    %v1671 = vunpack.c.0.s8 %v1670
    %v1672 = vlaneseq
    %v1673 = vshrl.u32 %v1672, 7
    %v1674 = vsub.s32 %v1671, %v1673
    %v1675 = vrot.slane %v1668, %v1674
    %v1676 = vcombine.low %v1651, %v1659
    %v1677 = vcombine.high %v1651, %v1659
    %v1679 = vunpack.c.l.s4 1934713408
    %v1680 = vunpack.c.0.s8 %v1679
    %v1681 = vlaneseq
    %v1682 = vshrl.u32 %v1681, 7
    %v1683 = vsub.s32 %v1680, %v1682
    %v1684 = vrot.slane %v1676, %v1683
    %v1686 = vunpack.c.l.s4 1934713408
    %v1687 = vunpack.c.0.s8 %v1686
    %v1688 = vlaneseq
    %v1689 = vshrl.u32 %v1688, 7
    %v1690 = vsub.s32 %v1687, %v1689
    %v1691 = vrot.slane %v1677, %v1690
    %v1692 = vcombine.low %v1667, %v1675
    %v1693 = vcombine.high %v1667, %v1675
    %v1695 = vunpack.c.l.s4 1934713408
    %v1696 = vunpack.c.0.s8 %v1695
    %v1697 = vlaneseq
    %v1698 = vshrl.u32 %v1697, 7
    %v1699 = vsub.s32 %v1696, %v1698
    %v1700 = vrot.slane %v1692, %v1699
    %v1702 = vunpack.c.l.s4 1934713408
    %v1703 = vunpack.c.0.s8 %v1702
    %v1704 = vlaneseq
    %v1705 = vshrl.u32 %v1704, 7
    %v1706 = vsub.s32 %v1703, %v1705
    %v1707 = vrot.slane %v1693, %v1706
    %v1708 = vcombine.low %v1684, %v1700
    %v1709 = vcombine.high %v1684, %v1700
    %v1710 = vcombine.low %v1691, %v1707
    %v1711 = vcombine.high %v1691, %v1707
    %v1712 = vcombine.low %v1616, %v1623
    %v1714 = vunpack.c.l.s4 1983009808
    %v1715 = vunpack.c.0.s8 %v1714
    %v1716 = vlaneseq
    %v1717 = vshrl.u32 %v1716, 7
    %v1718 = vsub.s32 %v1715, %v1717
    %v1719 = vrot.slane %v1712, %v1718
    %v1720 = vcombine.low %v1640, %v1641
    %v1722 = vunpack.c.l.s4 1983009808
    %v1723 = vunpack.c.0.s8 %v1722
    %v1724 = vlaneseq
    %v1725 = vshrl.u32 %v1724, 7
    %v1726 = vsub.s32 %v1723, %v1725
    %v1727 = vrot.slane %v1720, %v1726
    %v1728 = vcombine.low %v1632, %v1639
    %v1730 = vunpack.c.l.s4 1983009808
    %v1731 = vunpack.c.0.s8 %v1730
    %v1732 = vlaneseq
    %v1733 = vshrl.u32 %v1732, 7
    %v1734 = vsub.s32 %v1731, %v1733
    %v1735 = vrot.slane %v1728, %v1734
    %v1736 = vcombine.low %v1642, %v1643
    %v1738 = vunpack.c.l.s4 1983009808
    %v1739 = vunpack.c.0.s8 %v1738
    %v1740 = vlaneseq
    %v1741 = vshrl.u32 %v1740, 7
    %v1742 = vsub.s32 %v1739, %v1741
    %v1743 = vrot.slane %v1736, %v1742
    %v1744 = vcombine.low %v1719, %v1727
    %v1745 = vcombine.high %v1719, %v1727
    %v1747 = vunpack.c.l.s4 1934713408
    %v1748 = vunpack.c.0.s8 %v1747
    %v1749 = vlaneseq
    %v1750 = vshrl.u32 %v1749, 7
    %v1751 = vsub.s32 %v1748, %v1750
    %v1752 = vrot.slane %v1744, %v1751
    %v1754 = vunpack.c.l.s4 1934713408
    %v1755 = vunpack.c.0.s8 %v1754
    %v1756 = vlaneseq
    %v1757 = vshrl.u32 %v1756, 7
    %v1758 = vsub.s32 %v1755, %v1757
    %v1759 = vrot.slane %v1745, %v1758
    %v1760 = vcombine.low %v1735, %v1743
    %v1761 = vcombine.high %v1735, %v1743
    %v1763 = vunpack.c.l.s4 1934713408
    %v1764 = vunpack.c.0.s8 %v1763
    %v1765 = vlaneseq
    %v1766 = vshrl.u32 %v1765, 7
    %v1767 = vsub.s32 %v1764, %v1766
    %v1768 = vrot.slane %v1760, %v1767
    %v1770 = vunpack.c.l.s4 1934713408
    %v1771 = vunpack.c.0.s8 %v1770
    %v1772 = vlaneseq
    %v1773 = vshrl.u32 %v1772, 7
    %v1774 = vsub.s32 %v1771, %v1773
    %v1775 = vrot.slane %v1761, %v1774
    %v1776 = vcombine.low %v1752, %v1768
    %v1777 = vcombine.high %v1752, %v1768
    %v1778 = vcombine.low %v1759, %v1775
    %v1779 = vcombine.high %v1759, %v1775
    %1782 = vrot.lane.b32.xlu0 %v1709, 8
    %v1783 = vpop.permute.xlu0 %1782
    %1784 = vrot.lane.b32.xlu0 %v1777, 8
    %v1785 = vpop.permute.xlu0 %1784
    %1790 = vrot.lane.b32.xlu0 %v1710, 16
    %v1791 = vpop.permute.xlu0 %1790
    %1792 = vrot.lane.b32.xlu0 %v1778, 16
    %v1793 = vpop.permute.xlu0 %1792
    %1798 = vrot.lane.b32.xlu0 %v1711, 24
    %v1799 = vpop.permute.xlu0 %1798
    %1800 = vrot.lane.b32.xlu0 %v1779, 24
    %v1801 = vpop.permute.xlu0 %1800
    %v1804 = vsel %vm989, %v1708, %v1783
    %v1805 = vsel %vm989, %v1776, %v1785
    %v1806 = vsel %vm1239, %v1804, %v1791
    %v1807 = vsel %vm1239, %v1805, %v1793
    %vm1808 = vcmask 195584
    %v1809 = vsel %vm1808, %v1806, %v1799
    %v1810 = vsel %vm1808, %v1807, %v1801
    %v1811 = vld [vmem:[%s4] sm:$0x1]
    %v1812 = vld [vmem:[%s4 + $0x1] sm:$0x1]
    %v1813 = vld [vmem:[%s4 + $0x2] sm:$0x1]
    %v1814 = vpack.c.bf16 %v1810, %v1809
    %v1815 = vld [vmem:[%s3] sm:$0xf]
    %v1816 = vld [vmem:[%s3 + $0x4] sm:$0xf]
    %v1817 = vld [vmem:[%s3 + $0x8] sm:$0xf]
    %v1818 = vld [vmem:[%s3 + $0xc] sm:$0xf]
    %v1819 = vlaneseq
    %v1820 = vshrl.u32 %v1819, 7
    %v1821 = vsub.s32 0, %v1820
    %v1822 = vrot.slane %v1811, %v1821
    %v1827 = vunpack.c.l.b16 %v1815
    %v1828 = vunpack.c.l.b16 %v1816
    %v1829 = vunpack.c.l.b16 %v1817
    %v1830 = vunpack.c.l.b16 %v1818
    %v1831 = vpack.c.b16 %v1828, %v1827
    %v1832 = vpack.c.b16 %v1830, %v1829
    %v1836 = vsel %vm48, %v1814, 0
    %1838 = vmatprep.subr.bf16.mxu0 0
    %1839 = vmatpush1.bf16.msra.mxu0 0
    %1840 = vmatprep.subr.bf16.mxu0 0
    %1841 = vmatpush1.bf16.msra.mxu0 0
    %1842 = vmatprep.subr.bf16.mxu0 0
    %1843 = vmatpush1.bf16.msra.mxu0 0
    %1844 = vmatprep.subr.bf16.mxu0 0
    %1845 = vmatpush1.bf16.msra.mxu0 0
    %1846 = vmatprep.subr.bf16.mxu0 0
    %1847 = vmatpush1.bf16.msra.mxu0 0
    %1848 = vmatprep.subr.bf16.mxu0 0
    %1849 = vmatpush1.bf16.msra.mxu0 0
    %1850 = vmatprep.subr.bf16.mxu0 0
    %1851 = vmatpush1.bf16.msra.mxu0 %v1832
    %1852 = vmatprep.subr.bf16.mxu0 0
    %1853 = vmatpush1.bf16.msra.mxu0 %v1831
    %1854 = vmatprep.subr.bf16.mxu0 0
    %1855 = vmatpush2.bf16.msra.mxu0 0
    %1856 = vmatprep.subr.bf16.mxu0 0
    %1857 = vmatpush2.bf16.msra.mxu0 0
    %1858 = vmatprep.subr.bf16.mxu0 0
    %1859 = vmatpush2.bf16.msra.mxu0 0
    %1860 = vmatprep.subr.bf16.mxu0 0
    %1861 = vmatpush2.bf16.msra.mxu0 0
    %1862 = vmatprep.subr.bf16.mxu0 0
    %1863 = vmatpush2.bf16.msra.mxu0 0
    %1864 = vmatprep.subr.bf16.mxu0 0
    %1865 = vmatpush2.bf16.msra.mxu0 0
    %1866 = vmatprep.subr.bf16.mxu0 0
    %1867 = vmatpush2.bf16.msra.mxu0 0
    %1868 = vmatprep.subr.bf16.mxu0 0
    %1869 = vmatpush2.bf16.msra.mxu0 0
    %1870 = vmatprep.mubr.bf16.mxu0 0
    %1871 = vmatmul.mubr.bf16.gmra.mxu0 %v1836
    %v1872 = vpop.f32.mrf.mxu0
    %v1873 = vadd.f32 %v1822, %v1872
    %v1874 = vpop.f32.mrf.mxu0
    %v1875 = vpop.f32.mrf.mxu0
    %v1876 = vadd.f32 %v1822, %v1875
    %v1877 = vpop.f32.mrf.mxu0
    %1878 = vdwg.mxu0
    %v1879 = vadd.f32 %v22, %v1873
    %v1880 = vadd.f32 %v23, %v1876
    %v1881 = vsel %vm48, %v1879, 0.0
    %1882 = vadd.xlane.f32.xlu0 %v1881
    %v1883 = vpop.xlane.xlu0 %1882
    %v1884 = vsel %vm48, %v1880, 0.0
    %1885 = vadd.xlane.f32.xlu0 %v1884
    %v1886 = vpop.xlane.xlu0 %1885
    %v1887 = vrcp.pop 32.0
    %v1888 = vmul.f32 %v1883, %v1887
    %v1889 = vmul.f32 %v1886, %v1887
    %v1890 = vsub.f32 %v1879, %v1888
    %v1891 = vsub.f32 %v1880, %v1889
    %v1892 = vmul.f32 %v1890, %v1890
    %v1893 = vmul.f32 %v1891, %v1891
    %v1894 = vsel %vm48, %v1892, 0.0
    %1895 = vadd.xlane.f32.xlu0 %v1894
    %v1896 = vpop.xlane.xlu0 %1895
    %v1897 = vsel %vm48, %v1893, 0.0
    %1898 = vadd.xlane.f32.xlu0 %v1897
    %v1899 = vpop.xlane.xlu0 %1898
    %v1900 = vmul.f32 %v1896, %v1887
    %v1901 = vmul.f32 %v1899, %v1887
    %v1902 = vadd.f32 %v1900, 1e-05
    %v1903 = vadd.f32 %v1901, 1e-05
    %v1904 = vrsqrt.pop %v1902
    %v1905 = vrsqrt.pop %v1903
    %v1906 = vmul.f32 %v1890, %v1904
    %v1907 = vmul.f32 %v1891, %v1905
    %v1908 = vlaneseq
    %v1909 = vshrl.u32 %v1908, 7
    %v1910 = vsub.s32 0, %v1909
    %v1911 = vrot.slane %v1812, %v1910
    %v1912 = vmul.f32 %v1906, %v1911
    %v1913 = vmul.f32 %v1907, %v1911
    %v1914 = vlaneseq
    %v1915 = vshrl.u32 %v1914, 7
    %v1916 = vsub.s32 0, %v1915
    %v1917 = vrot.slane %v1813, %v1916
    %v1918 = vadd.f32 %v1912, %v1917
    %v1919 = vadd.f32 %v1913, %v1917
    %1920 = vst.msk [vmem:[#allocation2] sm:$0xff] %vm48, %v1918
    %1921 = vst.msk [vmem:[#allocation2 + $0x8] sm:$0xff] %vm48, %v1919
    // Predicated region
    $region22: #{san_forward.1} parent=1 // pred_check
      _
    $region23: #{san_forward.1} parent=1 // pred_check_branch
      %1923 = sbr.rel (0) target = $region25
    $region24: #{san_forward.1} parent=1 // pred_region
      %s1925 = ssub.s32 256, 256
      %1926 = vsyncadd [#allocation3], %s1925
      %s1927 = sshll.u32 [#allocation2], 4
      %s1928 = int_to_ptr.vmem [resolvable:$true] %s1927
      %1933 = dma.vmem_to_hbm [thread:$0]  %s1928, 256, %s5, [#allocation3], 128, 128, 8
    $region25: #{san_forward.1} parent=1 // pred_fallthru
      _
    // Predicated region
    $region26: #{san_forward.1} parent=1 // pred_check
      _
    $region27: #{san_forward.1} parent=1 // pred_check_branch
      %1935 = sbr.rel (0) target = $region29
    $region28: #{san_forward.1} parent=1 // pred_region
      %1936 = dma.done [#allocation3], 256
    $region29: #{san_forward.1} parent=1 // pred_fallthru
      _
    %1937 = vsyncpa [#allocation3], 1

</llo_original>
